<compile_context>
chip_gen: v7x
topology: tpu7x:2x2x1
jax: 0.10.0
libtpu: 0.0.40
codegen_flags: <defaults>
</compile_context>

<pallas_src>
import functools
import math

import jax
import jax.numpy as jnp
from jax.experimental import pallas as pl
from jax.experimental.pallas import tpu as pltpu

# ----------------------------- configuration -----------------------------
NUM_EMB = 32            # num_embeddings (C)
NUM_HEADS = 4
HEAD_SIZE = NUM_EMB // NUM_HEADS
CONTEXT_LEN = 8         # T
BATCH = 2


# ------------------------------- kernel ----------------------------------
def _mha_kernel(x_ref, wqkv_ref, wp_ref, bp_ref, o_ref, *,
                batch, seq_len, num_heads):
    BT, C = x_ref.shape
    B, T, H = batch, seq_len, num_heads
    HS = C // H
    G = B * H

    x = x_ref[...]                                                 # (B*T, C) f32

    # Fused Q|K|V projection: one (B*T, C) @ (C, 3C) MXU issue instead of 3.
    qkv = jnp.dot(x, wqkv_ref[...], preferred_element_type=jnp.float32)  # (BT, 3C)

    # Head relayout: (B*T, C) -> (B*H, T, HS); heads become a leading batch dim.
    def to_heads(z):
        z = z.reshape(B, T, H, HS)
        z = jnp.transpose(z, (0, 2, 1, 3))                         # (B, H, T, HS)
        return z.reshape(G, T, HS)

    q = to_heads(qkv[:, :C])
    k = to_heads(qkv[:, C:2 * C])
    v = to_heads(qkv[:, 2 * C:])

    # Batched scores over every (batch, head) pair; contract HS directly
    # (no materialized k^T / XLU transpose before the MXU push).
    scale = 1.0 / math.sqrt(C)       # PyTorch Head scales by C**0.5 (n_embd)
    s = jnp.einsum("gqd,gkd->gqk", q, k,
                   preferred_element_type=jnp.float32) * scale     # (G, T, T)

    # Single (T, T) causal triangle, broadcast over (batch, head). Finite
    # negative fill: every row keeps its diagonal, no inf/NaN hazard.
    row = jax.lax.broadcasted_iota(jnp.int32, (T, T), 0)
    col = jax.lax.broadcasted_iota(jnp.int32, (T, T), 1)
    s = jnp.where(col <= row, s, -1e30)

    # Explicit softmax: max-subtract + exp + approximate reciprocal (EUP).
    m = jnp.max(s, axis=-1, keepdims=True)
    e = jnp.exp(s - m)
    p = e * pl.reciprocal(jnp.sum(e, axis=-1, keepdims=True), approx=True)
    # TODO(synk): attention-weight dropout (p=0.2) skipped -> eval-mode identity.

    # PV matmul in bf16 (P in [0,1], safe) with f32 accumulation.
    o = jnp.einsum("gqk,gkd->gqd",
                   p.astype(jnp.bfloat16), v.astype(jnp.bfloat16),
                   preferred_element_type=jnp.float32)              # (G, T, HS)

    # Inverse head relayout: heads back onto the lane axis == torch.cat(heads, -1).
    cat = jnp.transpose(o.reshape(B, H, T, HS), (0, 2, 1, 3)).reshape(BT, C)

    # Output projection (+ bias); wp already pre-transposed & bf16 (wrapper-side).
    out = jnp.dot(cat.astype(jnp.bfloat16), wp_ref[...],
                  preferred_element_type=jnp.float32) + bp_ref[...]
    # TODO(synk): projection-output dropout (p=0.2) skipped -> eval-mode identity.

    # TODO(synk): output last dim is 32 (<128 lanes) -> masked stores on v5e; a
    # padded lane-dense output slab would need caller-side slicing.
    o_ref[...] = out.astype(o_ref.dtype)


# ------------------------------- wrapper ----------------------------------
def mha_forward(x, w_qkv, wp_t, bp):
    """x: (B, T, C) float32; returns (B, T, C)."""
    B, T, C = x.shape
    H, HS = NUM_HEADS, C // NUM_HEADS

    # Wrapper-side reshape / dtype cast: free XLA layout plumbing, keeps the
    # kernel refs clean 2D and avoids in-kernel relayout copies.
    x2 = x.reshape(B * T, C)
    wp_bf = wp_t.astype(jnp.bfloat16)

    flops = (2 * B * T * C * 3 * C              # fused QKV projection
             + 2 * 2 * B * H * T * T * HS       # scores + PV matmuls
             + 2 * B * T * C * C)               # output projection
    transcendentals = B * H * T * T + B * H * T  # exp + reciprocal
    bytes_accessed = (x2.size * 4 + w_qkv.size * 4 + wp_bf.size * 2
                      + bp.size * 4 + B * T * C * 4)

    vmem = pltpu.MemorySpace.VMEM
    out2 = pl.pallas_call(
        functools.partial(_mha_kernel, batch=B, seq_len=T, num_heads=H),
        out_shape=jax.ShapeDtypeStruct((B * T, C), x.dtype),
        in_specs=[pl.BlockSpec(memory_space=vmem)] * 4,   # full arrays, no grid
        out_specs=pl.BlockSpec(memory_space=vmem),
        cost_estimate=pl.CostEstimate(flops=flops,
                                      transcendentals=transcendentals,
                                      bytes_accessed=bytes_accessed),
    )(x2, w_qkv, wp_bf, bp)
    # TODO(synk): at realistic sizes, add a (batch*head, q-tile) grid with
    # dimension_semantics=("parallel", ...) (v7x megacore) and flash-style
    # online softmax, with tiles sized against 64 MiB VMEM (v7x).
    return out2.reshape(B, T, C)


# -------------------------- parameter construction -------------------------
def make_params(key):
    C, H, HS = NUM_EMB, NUM_HEADS, HEAD_SIZE
    ks = jax.random.split(key, 5)

    def linear_w(k, out_f, in_f):
        # PyTorch nn.Linear default init: U(-1/sqrt(in), 1/sqrt(in)), shape (out, in)
        bound = 1.0 / math.sqrt(in_f)
        return jax.random.uniform(k, (out_f, in_f), jnp.float32, -bound, bound)

    # Per-head weights (HS, C); pack transposed so x @ w concatenates all heads
    # along the last axis, then pack Q|K|V side-by-side -> one (C, 3C) weight.
    def pack(seed_key):
        heads = [linear_w(jax.random.fold_in(seed_key, h), HS, C) for h in range(H)]
        return jnp.concatenate([w.T for w in heads], axis=1)        # (C, C)

    w_qkv = jnp.concatenate([pack(ks[0]), pack(ks[1]), pack(ks[2])], axis=1)  # (C, 3C)

    wp = linear_w(ks[3], C, C)                       # projection weight (out, in)
    bound = 1.0 / math.sqrt(C)
    bp = jax.random.uniform(ks[4], (1, C), jnp.float32, -bound, bound)

    return w_qkv, wp.T, bp


# ----------------------------- pure-JAX reference ---------------------------
def reference_forward(x, w_qkv, wp_t, bp):
    B, T, C = x.shape
    HS = C // NUM_HEADS
    q = x @ w_qkv[:, :C]
    k = x @ w_qkv[:, C:2 * C]
    v = x @ w_qkv[:, 2 * C:]
    mask = jnp.tril(jnp.ones((T, T), bool))
    outs = []
    for h in range(NUM_HEADS):
        lo, hi = h * HS, (h + 1) * HS
        w = (q[..., lo:hi] @ jnp.swapaxes(k[..., lo:hi], -1, -2)) / math.sqrt(C)
        w = jnp.where(mask, w, -jnp.inf)
        w = jax.nn.softmax(w, -1)
        outs.append(w @ v[..., lo:hi])
    cat = jnp.concatenate(outs, -1)
    return cat @ wp_t + bp[0]


# --------------------------------- main -------------------------------------
if __name__ == "__main__":
    key = jax.random.PRNGKey(0)
    x = jax.random.normal(key, (BATCH, CONTEXT_LEN, NUM_EMB), jnp.float32)
    params = make_params(jax.random.PRNGKey(42))

    out = jax.block_until_ready(mha_forward(x, *params))
    ref = reference_forward(x, *params)

    assert out.shape == (BATCH, CONTEXT_LEN, NUM_EMB)
    # Tolerance loosened vs. the pure-f32 version: PV / projection matmuls use
    # bf16 MXU operands and softmax uses the approximate EUP reciprocal.
    assert jnp.allclose(out, ref, atol=2e-2, rtol=2e-2), "mismatch vs reference"
    print("KERNEL_OK")
</pallas_src>

<mosaic_0001>
module attributes {stable_mosaic.version = 11 : i64} {
  func.func @_mha_kernel(%arg0: memref<16x32xf32, #tpu.memory_space<vmem>>, %arg1: memref<32x96xf32, #tpu.memory_space<vmem>>, %arg2: memref<32x32xbf16, #tpu.memory_space<vmem>>, %arg3: memref<1x32xf32, #tpu.memory_space<vmem>>, %arg4: memref<16x32xf32, #tpu.memory_space<vmem>>) attributes {dimension_semantics = [], scalar_prefetch = 0 : i64, scratch_operands = 0 : i64, tpu.core_type = #tpu.core_type<tc>} {
    %c0 = arith.constant 0 : index
    %c0_0 = arith.constant 0 : index
    %0 = vector.load %arg0[%c0, %c0_0] : memref<16x32xf32, #tpu.memory_space<vmem>>, vector<16x32xf32>
    %c0_1 = arith.constant 0 : index
    %c0_2 = arith.constant 0 : index
    %1 = vector.load %arg1[%c0_1, %c0_2] : memref<32x96xf32, #tpu.memory_space<vmem>>, vector<32x96xf32>
    %cst = arith.constant dense<0.000000e+00> : vector<16x96xf32>
    %2 = tpu.matmul %0, %1, %cst {dimension_numbers = #tpu.dot_dimension_numbers<[1], [0], [0], [1], [0, 0, 1, 1], [], []>} : vector<16x32xf32>, vector<32x96xf32>, vector<16x96xf32> -> vector<16x96xf32>
    %3 = vector.extract_strided_slice %2 {offsets = [0, 0], sizes = [16, 32], strides = [1, 1]} : vector<16x96xf32> to vector<16x32xf32>
    %4 = vector.shape_cast %3 : vector<16x32xf32> to vector<2x8x4x8xf32>
    %5 = tpu.transpose %4, [0, 2, 1, 3] : vector<2x8x4x8xf32> -> vector<2x4x8x8xf32>
    %6 = vector.shape_cast %5 : vector<2x4x8x8xf32> to vector<8x8x8xf32>
    %7 = vector.extract_strided_slice %2 {offsets = [0, 32], sizes = [16, 32], strides = [1, 1]} : vector<16x96xf32> to vector<16x32xf32>
    %8 = vector.shape_cast %7 : vector<16x32xf32> to vector<2x8x4x8xf32>
    %9 = tpu.transpose %8, [0, 2, 1, 3] : vector<2x8x4x8xf32> -> vector<2x4x8x8xf32>
    %10 = vector.shape_cast %9 : vector<2x4x8x8xf32> to vector<8x8x8xf32>
    %11 = vector.extract_strided_slice %2 {offsets = [0, 64], sizes = [16, 32], strides = [1, 1]} : vector<16x96xf32> to vector<16x32xf32>
    %12 = vector.shape_cast %11 : vector<16x32xf32> to vector<2x8x4x8xf32>
    %13 = tpu.transpose %12, [0, 2, 1, 3] : vector<2x8x4x8xf32> -> vector<2x4x8x8xf32>
    %14 = vector.shape_cast %13 : vector<2x4x8x8xf32> to vector<8x8x8xf32>
    "tpu.trace_start"() <{level = 10 : i32, message = "gqd,gkd->gqk"}> : () -> ()
    %cst_3 = arith.constant dense<0.000000e+00> : vector<8x8x8xf32>
    %15 = tpu.matmul %6, %10, %cst_3 {dimension_numbers = #tpu.dot_dimension_numbers<[2], [2], [1], [1], [0, 0, 0, 1, 1, 1], [0], [0]>} : vector<8x8x8xf32>, vector<8x8x8xf32>, vector<8x8x8xf32> -> vector<8x8x8xf32>
    "tpu.trace_stop"() : () -> ()
    %cst_4 = arith.constant 0.176776692 : f32
    %16 = vector.broadcast %cst_4 : f32 to vector<8x8x8xf32>
    %17 = arith.mulf %15, %16 : vector<8x8x8xf32>
    %18 = tpu.iota {dimensions = array<i32: 0>} : vector<8x8xi32>
    %19 = tpu.iota {dimensions = array<i32: 1>} : vector<8x8xi32>
    %20 = arith.cmpi sle, %19, %18 : vector<8x8xi32>
    %cst_5 = arith.constant -1.000000e+30 : f32
    %21 = vector.shape_cast %20 : vector<8x8xi1> to vector<1x8x8xi1>
    %22 = vector.broadcast %21 : vector<1x8x8xi1> to vector<8x8x8xi1>
    %23 = vector.broadcast %cst_5 : f32 to vector<8x8x8xf32>
    %24 = arith.select %22, %17, %23 : vector<8x8x8xi1>, vector<8x8x8xf32>
    %cst_6 = arith.constant dense<0xFF800000> : vector<8x8xf32>
    %25 = vector.multi_reduction <maximumf>, %24, %cst_6 [2] : vector<8x8x8xf32> to vector<8x8xf32>
    %26 = vector.shape_cast %25 : vector<8x8xf32> to vector<8x8x1xf32>
    %27 = vector.broadcast %26 : vector<8x8x1xf32> to vector<8x8x8xf32>
    %28 = arith.subf %24, %27 : vector<8x8x8xf32>
    %29 = math.exp %28 : vector<8x8x8xf32>
    %cst_7 = arith.constant dense<0.000000e+00> : vector<8x8xf32>
    %30 = vector.multi_reduction <add>, %29, %cst_7 [2] : vector<8x8x8xf32> to vector<8x8xf32>
    %31 = vector.shape_cast %30 : vector<8x8xf32> to vector<8x8x1xf32>
    %32 = tpu.reciprocal %31 {approx = true} : vector<8x8x1xf32> -> vector<8x8x1xf32>
    %33 = vector.broadcast %32 : vector<8x8x1xf32> to vector<8x8x8xf32>
    %34 = arith.mulf %29, %33 : vector<8x8x8xf32>
    %35 = arith.truncf %34 : vector<8x8x8xf32> to vector<8x8x8xbf16>
    %36 = arith.truncf %14 : vector<8x8x8xf32> to vector<8x8x8xbf16>
    "tpu.trace_start"() <{level = 10 : i32, message = "gqk,gkd->gqd"}> : () -> ()
    %cst_8 = arith.constant dense<0.000000e+00> : vector<8x8x8xf32>
    %37 = tpu.matmul %35, %36, %cst_8 {dimension_numbers = #tpu.dot_dimension_numbers<[2], [1], [1], [2], [0, 0, 0, 1, 1, 2], [0], [0]>} : vector<8x8x8xbf16>, vector<8x8x8xbf16>, vector<8x8x8xf32> -> vector<8x8x8xf32>
    "tpu.trace_stop"() : () -> ()
    %38 = vector.shape_cast %37 : vector<8x8x8xf32> to vector<2x4x8x8xf32>
    %39 = tpu.transpose %38, [0, 2, 1, 3] : vector<2x4x8x8xf32> -> vector<2x8x4x8xf32>
    %40 = vector.shape_cast %39 : vector<2x8x4x8xf32> to vector<16x32xf32>
    %41 = arith.truncf %40 : vector<16x32xf32> to vector<16x32xbf16>
    %c0_9 = arith.constant 0 : index
    %c0_10 = arith.constant 0 : index
    %42 = vector.load %arg2[%c0_9, %c0_10] : memref<32x32xbf16, #tpu.memory_space<vmem>>, vector<32x32xbf16>
    %cst_11 = arith.constant dense<0.000000e+00> : vector<16x32xf32>
    %43 = tpu.matmul %41, %42, %cst_11 {dimension_numbers = #tpu.dot_dimension_numbers<[1], [0], [0], [1], [0, 0, 1, 1], [], []>} : vector<16x32xbf16>, vector<32x32xbf16>, vector<16x32xf32> -> vector<16x32xf32>
    %c0_12 = arith.constant 0 : index
    %c0_13 = arith.constant 0 : index
    %44 = vector.load %arg3[%c0_12, %c0_13] : memref<1x32xf32, #tpu.memory_space<vmem>>, vector<1x32xf32>
    %45 = vector.broadcast %44 : vector<1x32xf32> to vector<16x32xf32>
    %46 = arith.addf %43, %45 : vector<16x32xf32>
    %c0_14 = arith.constant 0 : index
    %c0_15 = arith.constant 0 : index
    %47 = vector.load %arg4[%c0_14, %c0_15] : memref<16x32xf32, #tpu.memory_space<vmem>>, vector<16x32xf32>
    tpu.vector_store %arg4[%c0_14, %c0_15], %46 {strides = array<i32>} : memref<16x32xf32, #tpu.memory_space<vmem>>, vector<16x32xf32>,
    return
  }
}

</mosaic_0001>

<llo_original>
// kernel: tpu_custom_call.1
$region0: #{tpu_custom_call.1}
  #allocation0 [shape = 'u32[]', space=smem, size = 0x4, offset = 0x4, fixed_abs, tag = 'smem constant byte address 0x4 - core index']
  #allocation1 [shape = 'u32[144,128]{1,0:T(1,128)}', space=vmem, size = 0x12000, scoped, tag = 'internal scratch']
  %s0 = inlined_call_operand.hbm [shape: f32[16,32], index: 0, kind: input, shape index: {}]
  %s1 = inlined_call_operand.hbm [shape: f32[32,96], index: 1, kind: input, shape index: {}]
  %s2 = inlined_call_operand.hbm [shape: bf16[32,32], index: 2, kind: input, shape index: {}]
  %s3 = inlined_call_operand.vmem [shape: f32[1,32], index: 3, kind: input, shape index: {}]
  %s4 = inlined_call_operand.hbm [shape: f32[16,32], index: 4, kind: output, shape index: {}]
  %s5 = sld [smem:[#allocation0]]
  $region38: #{tpu_custom_call.1} parent=0
    _
  %s7 = ssub.s32 1, %s5
  %s8 = scalar_select 0, %s7, %s5
  $region1: #{tpu_custom_call.1} parent=0
    #allocation2 [shape = 'u8[8192]{0}', space=vmem, size = 0x2000, scoped, tag = 'input window, operand 0, single buffered']
    #allocation3 [shape = 's32[1]{0}', space=sflag, size = 0x4, scoped, tag = 'scoped memory for tpu_custom_call.1']
    #allocation4 [shape = 's32[1]{0}', space=sflag, size = 0x4, scoped, tag = 'scoped memory for tpu_custom_call.1']
    #allocation5 [shape = 'u8[16384]{0}', space=vmem, size = 0x4000, scoped, tag = 'input window, operand 1, single buffered']
    #allocation6 [shape = 's32[1]{0}', space=sflag, size = 0x4, scoped, tag = 'scoped memory for tpu_custom_call.1']
    #allocation7 [shape = 'u8[8192]{0}', space=vmem, size = 0x2000, scoped, tag = 'input window, operand 2, single buffered']
    #allocation8 [shape = 'u8[8192]{0}', space=vmem, size = 0x2000, scoped, tag = 'output window, operand 0, single buffered']
    %9 = vsyncpa [#allocation3], 0
    %10 = vsyncpa [#allocation6], 0
    %11 = vsyncpa [#allocation4], 0
    // Predicated region
    $region2: #{tpu_custom_call.1} parent=1 // pred_check
      _
    $region3: #{tpu_custom_call.1} parent=1 // pred_check_branch
      %13 = sbr.rel (0) target = $region5
    $region4: #{tpu_custom_call.1} parent=1 // pred_region
      %s15 = ssub.s32 256, 256
      %16 = vsyncadd [#allocation3], %s15
      %s17 = sshll.u32 [#allocation2], 4
      %s18 = int_to_ptr.vmem [resolvable:$true] %s17
      %23 = dma.hbm_to_vmem [thread:$0]  %s0, 256, %s18, [#allocation3], 128, 128, 8
    $region5: #{tpu_custom_call.1} parent=1 // pred_fallthru
      _
    // Predicated region
    $region6: #{tpu_custom_call.1} parent=1 // pred_check
      _
    $region7: #{tpu_custom_call.1} parent=1 // pred_check_branch
      %25 = sbr.rel (0) target = $region9
    $region8: #{tpu_custom_call.1} parent=1 // pred_region
      %s27 = ssub.s32 512, 512
      %28 = vsyncadd [#allocation6], %s27
      %s29 = sshll.u32 [#allocation5], 4
      %s30 = int_to_ptr.vmem [resolvable:$true] %s29
      %35 = dma.hbm_to_vmem [thread:$0]  %s1, 512, %s30, [#allocation6], 128, 128, 8
    $region9: #{tpu_custom_call.1} parent=1 // pred_fallthru
      _
    // Predicated region
    $region10: #{tpu_custom_call.1} parent=1 // pred_check
      _
    $region11: #{tpu_custom_call.1} parent=1 // pred_check_branch
      %37 = sbr.rel (0) target = $region13
    $region12: #{tpu_custom_call.1} parent=1 // pred_region
      %s39 = ssub.s32 256, 256
      %40 = vsyncadd [#allocation6], %s39
      %s41 = sshll.u32 [#allocation7], 4
      %s42 = int_to_ptr.vmem [resolvable:$true] %s41
      %47 = dma.hbm_to_vmem [thread:$0]  %s2, 256, %s42, [#allocation6], 64, 64, 4
    $region13: #{tpu_custom_call.1} parent=1 // pred_fallthru
      _
    // Predicated region
    $region14: #{tpu_custom_call.1} parent=1 // pred_check
      _
    $region15: #{tpu_custom_call.1} parent=1 // pred_check_branch
      %49 = sbr.rel (0) target = $region17
    $region16: #{tpu_custom_call.1} parent=1 // pred_region
      _
    $region17: #{tpu_custom_call.1} parent=1 // pred_fallthru
      _
    // Predicated region
    $region18: #{tpu_custom_call.1} parent=1 // pred_check
      _
    $region19: #{tpu_custom_call.1} parent=1 // pred_check_branch
      %51 = sbr.rel (0) target = $region21
    $region20: #{tpu_custom_call.1} parent=1 // pred_region
      %52 = dma.done [#allocation3], 256
    $region21: #{tpu_custom_call.1} parent=1 // pred_fallthru
      _
    // Predicated region
    $region22: #{tpu_custom_call.1} parent=1 // pred_check
      _
    $region23: #{tpu_custom_call.1} parent=1 // pred_check_branch
      %54 = sbr.rel (0) target = $region25
    $region24: #{tpu_custom_call.1} parent=1 // pred_region
      %55 = dma.done [#allocation6], 512
    $region25: #{tpu_custom_call.1} parent=1 // pred_fallthru
      _
    // Predicated region
    $region26: #{tpu_custom_call.1} parent=1 // pred_check
      _
    $region27: #{tpu_custom_call.1} parent=1 // pred_check_branch
      %57 = sbr.rel (0) target = $region29
    $region28: #{tpu_custom_call.1} parent=1 // pred_region
      %58 = dma.done [#allocation6], 256
    $region29: #{tpu_custom_call.1} parent=1 // pred_fallthru
      _
    %v60 = vld [vmem:[#allocation2] sm:$0xff]
    %v61 = vld [vmem:[#allocation2 + $0x8] sm:$0xff]
    %v62 = vld [vmem:[#allocation5] sm:$0xff]
    %v63 = vld [vmem:[#allocation5 + $0x8] sm:$0xff]
    %v64 = vld [vmem:[#allocation5 + $0x10] sm:$0xff]
    %v65 = vld [vmem:[#allocation5 + $0x18] sm:$0xff]
    %vm66 = vcmask 261120
    %v68 = vsel %vm66, %v60, 0
    %v71 = vsel %vm66, %v61, 0
    %73 = vmatprep.subr.mxu0 0.0
    %74 = vmatpush1.msra.mxu0 %v62
    %75 = vmatprep.subr.mxu0 0.0
    %76 = vmatpush1.msra.mxu0 %v63
    %77 = vmatprep.subr.mxu0 0.0
    %78 = vmatpush1.msra.mxu0 %v64
    %79 = vmatprep.subr.mxu0 0.0
    %80 = vmatpush1.msra.mxu0 %v65
    %81 = vmatprep.subr.mxu0 0.0
    %82 = vmatpush1.msra.mxu0 0.0
    %83 = vmatprep.subr.mxu0 0.0
    %84 = vmatpush1.msra.mxu0 0.0
    %85 = vmatprep.subr.mxu0 0.0
    %86 = vmatpush1.msra.mxu0 0.0
    %87 = vmatprep.subr.mxu0 0.0
    %88 = vmatpush1.msra.mxu0 0.0
    %89 = vmatprep.subr.mxu0 0.0
    %90 = vmatpush1.msra.mxu0 0.0
    %91 = vmatprep.subr.mxu0 0.0
    %92 = vmatpush1.msra.mxu0 0.0
    %93 = vmatprep.subr.mxu0 0.0
    %94 = vmatpush1.msra.mxu0 0.0
    %95 = vmatprep.subr.mxu0 0.0
    %96 = vmatpush1.msra.mxu0 0.0
    %97 = vmatprep.subr.mxu0 0.0
    %98 = vmatpush1.msra.mxu0 0.0
    %99 = vmatprep.subr.mxu0 0.0
    %100 = vmatpush1.msra.mxu0 0.0
    %101 = vmatprep.subr.mxu0 0.0
    %102 = vmatpush1.msra.mxu0 0.0
    %103 = vmatprep.subr.mxu0 0.0
    %104 = vmatpush1.msra.mxu0 0.0
    %105 = vmatprep.subr.mxu0 0.0
    %106 = vmatpush1.msra.mxu0 0.0
    %107 = vmatprep.subr.mxu0 0.0
    %108 = vmatpush1.msra.mxu0 0.0
    %109 = vmatprep.subr.mxu0 0.0
    %110 = vmatpush1.msra.mxu0 0.0
    %111 = vmatprep.subr.mxu0 0.0
    %112 = vmatpush1.msra.mxu0 0.0
    %113 = vmatprep.subr.mxu0 0.0
    %114 = vmatpush1.msra.mxu0 0.0
    %115 = vmatprep.subr.mxu0 0.0
    %116 = vmatpush1.msra.mxu0 0.0
    %117 = vmatprep.subr.mxu0 0.0
    %118 = vmatpush1.msra.mxu0 0.0
    %119 = vmatprep.subr.mxu0 0.0
    %120 = vmatpush1.msra.mxu0 0.0
    %121 = vmatprep.subr.mxu0 0.0
    %122 = vmatpush1.msra.mxu0 0.0
    %123 = vmatprep.subr.mxu0 0.0
    %124 = vmatpush1.msra.mxu0 0.0
    %125 = vmatprep.subr.mxu0 0.0
    %126 = vmatpush1.msra.mxu0 0.0
    %127 = vmatprep.subr.mxu0 0.0
    %128 = vmatpush1.msra.mxu0 0.0
    %129 = vmatprep.subr.mxu0 0.0
    %130 = vmatpush1.msra.mxu0 0.0
    %131 = vmatprep.subr.mxu0 0.0
    %132 = vmatpush1.msra.mxu0 0.0
    %133 = vmatprep.subr.mxu0 0.0
    %134 = vmatpush1.msra.mxu0 0.0
    %135 = vmatprep.subr.mxu0 0.0
    %136 = vmatpush1.msra.mxu0 0.0
    %137 = vmatprep.mubr.f32.mxu0 0.0
    %138 = vmatmul.mubr.f32.gmra.mrb[0].mxu0 %v68
    %v139 = vpop.f32.mrb[0].mxu0
    %v140 = vadd.f32 0.0, %v139
    %v141 = vpop.f32.mrb[0].mxu0
    %142 = vmatprep.mubr.f32.mxu0 0.0
    %143 = vmatmul.mubr.f32.gmra.mrb[0].mxu0 %v71
    %v144 = vpop.f32.mrb[0].mxu0
    %v145 = vadd.f32 0.0, %v144
    %v146 = vpop.f32.mrb[0].mxu0
    %147 = vdwg.mxu0
    %150 = vrot.lane.b32.xlu0 %v140, 120
    %v151 = vpop.permute.xlu0 %150
    %152 = vrot.lane.b32.xlu0 %v145, 120
    %v153 = vpop.permute.xlu0 %152
    %156 = vrot.lane.b32.xlu0 %v140, 112
    %v157 = vpop.permute.xlu0 %156
    %158 = vrot.lane.b32.xlu0 %v145, 112
    %v159 = vpop.permute.xlu0 %158
    %162 = vrot.lane.b32.xlu0 %v140, 104
    %v163 = vpop.permute.xlu0 %162
    %164 = vrot.lane.b32.xlu0 %v145, 104
    %v165 = vpop.permute.xlu0 %164
    %v168 = vcombine.low %v140, %v157
    %v169 = vcombine.high %v140, %v157
    %v171 = vunpack.c.l.s4 1983009808
    %v172 = vunpack.c.0.s8 %v171
    %v173 = vlaneseq
    %v174 = vshrl.u32 %v173, 7
    %v175 = vsub.s32 %v172, %v174
    %v176 = vrot.slane %v168, %v175
    %v178 = vunpack.c.l.s4 1983009808
    %v179 = vunpack.c.0.s8 %v178
    %v180 = vlaneseq
    %v181 = vshrl.u32 %v180, 7
    %v182 = vsub.s32 %v179, %v181
    %v183 = vrot.slane %v169, %v182
    %v184 = vcombine.low %v151, %v163
    %v185 = vcombine.high %v151, %v163
    %v187 = vunpack.c.l.s4 1983009808
    %v188 = vunpack.c.0.s8 %v187
    %v189 = vlaneseq
    %v190 = vshrl.u32 %v189, 7
    %v191 = vsub.s32 %v188, %v190
    %v192 = vrot.slane %v184, %v191
    %v194 = vunpack.c.l.s4 1983009808
    %v195 = vunpack.c.0.s8 %v194
    %v196 = vlaneseq
    %v197 = vshrl.u32 %v196, 7
    %v198 = vsub.s32 %v195, %v197
    %v199 = vrot.slane %v185, %v198
    %v200 = vcombine.low %v176, %v192
    %v201 = vcombine.high %v176, %v192
    %v203 = vunpack.c.l.s4 1934713408
    %v204 = vunpack.c.0.s8 %v203
    %v205 = vlaneseq
    %v206 = vshrl.u32 %v205, 7
    %v207 = vsub.s32 %v204, %v206
    %v208 = vrot.slane %v200, %v207
    %v210 = vunpack.c.l.s4 1934713408
    %v211 = vunpack.c.0.s8 %v210
    %v212 = vlaneseq
    %v213 = vshrl.u32 %v212, 7
    %v214 = vsub.s32 %v211, %v213
    %v215 = vrot.slane %v201, %v214
    %v216 = vcombine.low %v183, %v199
    %v217 = vcombine.high %v183, %v199
    %v219 = vunpack.c.l.s4 1934713408
    %v220 = vunpack.c.0.s8 %v219
    %v221 = vlaneseq
    %v222 = vshrl.u32 %v221, 7
    %v223 = vsub.s32 %v220, %v222
    %v224 = vrot.slane %v216, %v223
    %v226 = vunpack.c.l.s4 1934713408
    %v227 = vunpack.c.0.s8 %v226
    %v228 = vlaneseq
    %v229 = vshrl.u32 %v228, 7
    %v230 = vsub.s32 %v227, %v229
    %v231 = vrot.slane %v217, %v230
    %v232 = vcombine.high %v208, 0.0
    %v233 = vcombine.high %v215, 0.0
    %v234 = vcombine.high %v224, 0.0
    %v235 = vcombine.high %v231, 0.0
    %v236 = vcombine.low %v145, %v159
    %v237 = vcombine.high %v145, %v159
    %v239 = vunpack.c.l.s4 1983009808
    %v240 = vunpack.c.0.s8 %v239
    %v241 = vlaneseq
    %v242 = vshrl.u32 %v241, 7
    %v243 = vsub.s32 %v240, %v242
    %v244 = vrot.slane %v236, %v243
    %v246 = vunpack.c.l.s4 1983009808
    %v247 = vunpack.c.0.s8 %v246
    %v248 = vlaneseq
    %v249 = vshrl.u32 %v248, 7
    %v250 = vsub.s32 %v247, %v249
    %v251 = vrot.slane %v237, %v250
    %v252 = vcombine.low %v153, %v165
    %v253 = vcombine.high %v153, %v165
    %v255 = vunpack.c.l.s4 1983009808
    %v256 = vunpack.c.0.s8 %v255
    %v257 = vlaneseq
    %v258 = vshrl.u32 %v257, 7
    %v259 = vsub.s32 %v256, %v258
    %v260 = vrot.slane %v252, %v259
    %v262 = vunpack.c.l.s4 1983009808
    %v263 = vunpack.c.0.s8 %v262
    %v264 = vlaneseq
    %v265 = vshrl.u32 %v264, 7
    %v266 = vsub.s32 %v263, %v265
    %v267 = vrot.slane %v253, %v266
    %v268 = vcombine.low %v244, %v260
    %v269 = vcombine.high %v244, %v260
    %v271 = vunpack.c.l.s4 1934713408
    %v272 = vunpack.c.0.s8 %v271
    %v273 = vlaneseq
    %v274 = vshrl.u32 %v273, 7
    %v275 = vsub.s32 %v272, %v274
    %v276 = vrot.slane %v268, %v275
    %v278 = vunpack.c.l.s4 1934713408
    %v279 = vunpack.c.0.s8 %v278
    %v280 = vlaneseq
    %v281 = vshrl.u32 %v280, 7
    %v282 = vsub.s32 %v279, %v281
    %v283 = vrot.slane %v269, %v282
    %v284 = vcombine.low %v251, %v267
    %v285 = vcombine.high %v251, %v267
    %v287 = vunpack.c.l.s4 1934713408
    %v288 = vunpack.c.0.s8 %v287
    %v289 = vlaneseq
    %v290 = vshrl.u32 %v289, 7
    %v291 = vsub.s32 %v288, %v290
    %v292 = vrot.slane %v284, %v291
    %v294 = vunpack.c.l.s4 1934713408
    %v295 = vunpack.c.0.s8 %v294
    %v296 = vlaneseq
    %v297 = vshrl.u32 %v296, 7
    %v298 = vsub.s32 %v295, %v297
    %v299 = vrot.slane %v285, %v298
    %v300 = vcombine.high %v276, 0.0
    %v301 = vcombine.high %v283, 0.0
    %v302 = vcombine.high %v292, 0.0
    %v303 = vcombine.high %v299, 0.0
    %v304 = vcombine.low %v208, %v215
    %v306 = vunpack.c.l.s4 1983009808
    %v307 = vunpack.c.0.s8 %v306
    %v308 = vlaneseq
    %v309 = vshrl.u32 %v308, 7
    %v310 = vsub.s32 %v307, %v309
    %v311 = vrot.slane %v304, %v310
    %v312 = vcombine.low %v232, %v233
    %v314 = vunpack.c.l.s4 1983009808
    %v315 = vunpack.c.0.s8 %v314
    %v316 = vlaneseq
    %v317 = vshrl.u32 %v316, 7
    %v318 = vsub.s32 %v315, %v317
    %v319 = vrot.slane %v312, %v318
    %v320 = vcombine.low %v224, %v231
    %v322 = vunpack.c.l.s4 1983009808
    %v323 = vunpack.c.0.s8 %v322
    %v324 = vlaneseq
    %v325 = vshrl.u32 %v324, 7
    %v326 = vsub.s32 %v323, %v325
    %v327 = vrot.slane %v320, %v326
    %v328 = vcombine.low %v234, %v235
    %v330 = vunpack.c.l.s4 1983009808
    %v331 = vunpack.c.0.s8 %v330
    %v332 = vlaneseq
    %v333 = vshrl.u32 %v332, 7
    %v334 = vsub.s32 %v331, %v333
    %v335 = vrot.slane %v328, %v334
    %v336 = vcombine.low %v311, %v319
    %v337 = vcombine.high %v311, %v319
    %v339 = vunpack.c.l.s4 1934713408
    %v340 = vunpack.c.0.s8 %v339
    %v341 = vlaneseq
    %v342 = vshrl.u32 %v341, 7
    %v343 = vsub.s32 %v340, %v342
    %v344 = vrot.slane %v336, %v343
    %v346 = vunpack.c.l.s4 1934713408
    %v347 = vunpack.c.0.s8 %v346
    %v348 = vlaneseq
    %v349 = vshrl.u32 %v348, 7
    %v350 = vsub.s32 %v347, %v349
    %v351 = vrot.slane %v337, %v350
    %v352 = vcombine.low %v327, %v335
    %v353 = vcombine.high %v327, %v335
    %v355 = vunpack.c.l.s4 1934713408
    %v356 = vunpack.c.0.s8 %v355
    %v357 = vlaneseq
    %v358 = vshrl.u32 %v357, 7
    %v359 = vsub.s32 %v356, %v358
    %v360 = vrot.slane %v352, %v359
    %v362 = vunpack.c.l.s4 1934713408
    %v363 = vunpack.c.0.s8 %v362
    %v364 = vlaneseq
    %v365 = vshrl.u32 %v364, 7
    %v366 = vsub.s32 %v363, %v365
    %v367 = vrot.slane %v353, %v366
    %v368 = vcombine.low %v344, %v360
    %v369 = vcombine.high %v344, %v360
    %v370 = vcombine.low %v351, %v367
    %v371 = vcombine.high %v351, %v367
    %v372 = vcombine.low %v276, %v283
    %v374 = vunpack.c.l.s4 1983009808
    %v375 = vunpack.c.0.s8 %v374
    %v376 = vlaneseq
    %v377 = vshrl.u32 %v376, 7
    %v378 = vsub.s32 %v375, %v377
    %v379 = vrot.slane %v372, %v378
    %v380 = vcombine.low %v300, %v301
    %v382 = vunpack.c.l.s4 1983009808
    %v383 = vunpack.c.0.s8 %v382
    %v384 = vlaneseq
    %v385 = vshrl.u32 %v384, 7
    %v386 = vsub.s32 %v383, %v385
    %v387 = vrot.slane %v380, %v386
    %v388 = vcombine.low %v292, %v299
    %v390 = vunpack.c.l.s4 1983009808
    %v391 = vunpack.c.0.s8 %v390
    %v392 = vlaneseq
    %v393 = vshrl.u32 %v392, 7
    %v394 = vsub.s32 %v391, %v393
    %v395 = vrot.slane %v388, %v394
    %v396 = vcombine.low %v302, %v303
    %v398 = vunpack.c.l.s4 1983009808
    %v399 = vunpack.c.0.s8 %v398
    %v400 = vlaneseq
    %v401 = vshrl.u32 %v400, 7
    %v402 = vsub.s32 %v399, %v401
    %v403 = vrot.slane %v396, %v402
    %v404 = vcombine.low %v379, %v387
    %v405 = vcombine.high %v379, %v387
    %v407 = vunpack.c.l.s4 1934713408
    %v408 = vunpack.c.0.s8 %v407
    %v409 = vlaneseq
    %v410 = vshrl.u32 %v409, 7
    %v411 = vsub.s32 %v408, %v410
    %v412 = vrot.slane %v404, %v411
    %v414 = vunpack.c.l.s4 1934713408
    %v415 = vunpack.c.0.s8 %v414
    %v416 = vlaneseq
    %v417 = vshrl.u32 %v416, 7
    %v418 = vsub.s32 %v415, %v417
    %v419 = vrot.slane %v405, %v418
    %v420 = vcombine.low %v395, %v403
    %v421 = vcombine.high %v395, %v403
    %v423 = vunpack.c.l.s4 1934713408
    %v424 = vunpack.c.0.s8 %v423
    %v425 = vlaneseq
    %v426 = vshrl.u32 %v425, 7
    %v427 = vsub.s32 %v424, %v426
    %v428 = vrot.slane %v420, %v427
    %v430 = vunpack.c.l.s4 1934713408
    %v431 = vunpack.c.0.s8 %v430
    %v432 = vlaneseq
    %v433 = vshrl.u32 %v432, 7
    %v434 = vsub.s32 %v431, %v433
    %v435 = vrot.slane %v421, %v434
    %v436 = vcombine.low %v412, %v428
    %v437 = vcombine.high %v412, %v428
    %v438 = vcombine.low %v419, %v435
    %v439 = vcombine.high %v419, %v435
    %440 = vrot.lane.b32.xlu0 %v140, 96
    %v441 = vpop.permute.xlu0 %440
    %442 = vrot.lane.b32.xlu0 %v145, 96
    %v443 = vpop.permute.xlu0 %442
    %444 = vrot.lane.b32.xlu0 %v151, 96
    %v445 = vpop.permute.xlu0 %444
    %446 = vrot.lane.b32.xlu0 %v153, 96
    %v447 = vpop.permute.xlu0 %446
    %448 = vrot.lane.b32.xlu0 %v157, 96
    %v449 = vpop.permute.xlu0 %448
    %450 = vrot.lane.b32.xlu0 %v159, 96
    %v451 = vpop.permute.xlu0 %450
    %452 = vrot.lane.b32.xlu0 %v163, 96
    %v453 = vpop.permute.xlu0 %452
    %454 = vrot.lane.b32.xlu0 %v165, 96
    %v455 = vpop.permute.xlu0 %454
    %v464 = vcombine.low %v441, %v449
    %v465 = vcombine.high %v441, %v449
    %v467 = vunpack.c.l.s4 1983009808
    %v468 = vunpack.c.0.s8 %v467
    %v469 = vlaneseq
    %v470 = vshrl.u32 %v469, 7
    %v471 = vsub.s32 %v468, %v470
    %v472 = vrot.slane %v464, %v471
    %v474 = vunpack.c.l.s4 1983009808
    %v475 = vunpack.c.0.s8 %v474
    %v476 = vlaneseq
    %v477 = vshrl.u32 %v476, 7
    %v478 = vsub.s32 %v475, %v477
    %v479 = vrot.slane %v465, %v478
    %v480 = vcombine.low %v445, %v453
    %v481 = vcombine.high %v445, %v453
    %v483 = vunpack.c.l.s4 1983009808
    %v484 = vunpack.c.0.s8 %v483
    %v485 = vlaneseq
    %v486 = vshrl.u32 %v485, 7
    %v487 = vsub.s32 %v484, %v486
    %v488 = vrot.slane %v480, %v487
    %v490 = vunpack.c.l.s4 1983009808
    %v491 = vunpack.c.0.s8 %v490
    %v492 = vlaneseq
    %v493 = vshrl.u32 %v492, 7
    %v494 = vsub.s32 %v491, %v493
    %v495 = vrot.slane %v481, %v494
    %v496 = vcombine.low %v472, %v488
    %v497 = vcombine.high %v472, %v488
    %v499 = vunpack.c.l.s4 1934713408
    %v500 = vunpack.c.0.s8 %v499
    %v501 = vlaneseq
    %v502 = vshrl.u32 %v501, 7
    %v503 = vsub.s32 %v500, %v502
    %v504 = vrot.slane %v496, %v503
    %v506 = vunpack.c.l.s4 1934713408
    %v507 = vunpack.c.0.s8 %v506
    %v508 = vlaneseq
    %v509 = vshrl.u32 %v508, 7
    %v510 = vsub.s32 %v507, %v509
    %v511 = vrot.slane %v497, %v510
    %v512 = vcombine.low %v479, %v495
    %v513 = vcombine.high %v479, %v495
    %v515 = vunpack.c.l.s4 1934713408
    %v516 = vunpack.c.0.s8 %v515
    %v517 = vlaneseq
    %v518 = vshrl.u32 %v517, 7
    %v519 = vsub.s32 %v516, %v518
    %v520 = vrot.slane %v512, %v519
    %v522 = vunpack.c.l.s4 1934713408
    %v523 = vunpack.c.0.s8 %v522
    %v524 = vlaneseq
    %v525 = vshrl.u32 %v524, 7
    %v526 = vsub.s32 %v523, %v525
    %v527 = vrot.slane %v513, %v526
    %v528 = vcombine.high %v504, 0.0
    %v529 = vcombine.high %v511, 0.0
    %v530 = vcombine.high %v520, 0.0
    %v531 = vcombine.high %v527, 0.0
    %v532 = vcombine.low %v443, %v451
    %v533 = vcombine.high %v443, %v451
    %v535 = vunpack.c.l.s4 1983009808
    %v536 = vunpack.c.0.s8 %v535
    %v537 = vlaneseq
    %v538 = vshrl.u32 %v537, 7
    %v539 = vsub.s32 %v536, %v538
    %v540 = vrot.slane %v532, %v539
    %v542 = vunpack.c.l.s4 1983009808
    %v543 = vunpack.c.0.s8 %v542
    %v544 = vlaneseq
    %v545 = vshrl.u32 %v544, 7
    %v546 = vsub.s32 %v543, %v545
    %v547 = vrot.slane %v533, %v546
    %v548 = vcombine.low %v447, %v455
    %v549 = vcombine.high %v447, %v455
    %v551 = vunpack.c.l.s4 1983009808
    %v552 = vunpack.c.0.s8 %v551
    %v553 = vlaneseq
    %v554 = vshrl.u32 %v553, 7
    %v555 = vsub.s32 %v552, %v554
    %v556 = vrot.slane %v548, %v555
    %v558 = vunpack.c.l.s4 1983009808
    %v559 = vunpack.c.0.s8 %v558
    %v560 = vlaneseq
    %v561 = vshrl.u32 %v560, 7
    %v562 = vsub.s32 %v559, %v561
    %v563 = vrot.slane %v549, %v562
    %v564 = vcombine.low %v540, %v556
    %v565 = vcombine.high %v540, %v556
    %v567 = vunpack.c.l.s4 1934713408
    %v568 = vunpack.c.0.s8 %v567
    %v569 = vlaneseq
    %v570 = vshrl.u32 %v569, 7
    %v571 = vsub.s32 %v568, %v570
    %v572 = vrot.slane %v564, %v571
    %v574 = vunpack.c.l.s4 1934713408
    %v575 = vunpack.c.0.s8 %v574
    %v576 = vlaneseq
    %v577 = vshrl.u32 %v576, 7
    %v578 = vsub.s32 %v575, %v577
    %v579 = vrot.slane %v565, %v578
    %v580 = vcombine.low %v547, %v563
    %v581 = vcombine.high %v547, %v563
    %v583 = vunpack.c.l.s4 1934713408
    %v584 = vunpack.c.0.s8 %v583
    %v585 = vlaneseq
    %v586 = vshrl.u32 %v585, 7
    %v587 = vsub.s32 %v584, %v586
    %v588 = vrot.slane %v580, %v587
    %v590 = vunpack.c.l.s4 1934713408
    %v591 = vunpack.c.0.s8 %v590
    %v592 = vlaneseq
    %v593 = vshrl.u32 %v592, 7
    %v594 = vsub.s32 %v591, %v593
    %v595 = vrot.slane %v581, %v594
    %v596 = vcombine.high %v572, 0.0
    %v597 = vcombine.high %v579, 0.0
    %v598 = vcombine.high %v588, 0.0
    %v599 = vcombine.high %v595, 0.0
    %v600 = vcombine.low %v504, %v511
    %v602 = vunpack.c.l.s4 1983009808
    %v603 = vunpack.c.0.s8 %v602
    %v604 = vlaneseq
    %v605 = vshrl.u32 %v604, 7
    %v606 = vsub.s32 %v603, %v605
    %v607 = vrot.slane %v600, %v606
    %v608 = vcombine.low %v528, %v529
    %v610 = vunpack.c.l.s4 1983009808
    %v611 = vunpack.c.0.s8 %v610
    %v612 = vlaneseq
    %v613 = vshrl.u32 %v612, 7
    %v614 = vsub.s32 %v611, %v613
    %v615 = vrot.slane %v608, %v614
    %v616 = vcombine.low %v520, %v527
    %v618 = vunpack.c.l.s4 1983009808
    %v619 = vunpack.c.0.s8 %v618
    %v620 = vlaneseq
    %v621 = vshrl.u32 %v620, 7
    %v622 = vsub.s32 %v619, %v621
    %v623 = vrot.slane %v616, %v622
    %v624 = vcombine.low %v530, %v531
    %v626 = vunpack.c.l.s4 1983009808
    %v627 = vunpack.c.0.s8 %v626
    %v628 = vlaneseq
    %v629 = vshrl.u32 %v628, 7
    %v630 = vsub.s32 %v627, %v629
    %v631 = vrot.slane %v624, %v630
    %v632 = vcombine.low %v607, %v615
    %v633 = vcombine.high %v607, %v615
    %v635 = vunpack.c.l.s4 1934713408
    %v636 = vunpack.c.0.s8 %v635
    %v637 = vlaneseq
    %v638 = vshrl.u32 %v637, 7
    %v639 = vsub.s32 %v636, %v638
    %v640 = vrot.slane %v632, %v639
    %v642 = vunpack.c.l.s4 1934713408
    %v643 = vunpack.c.0.s8 %v642
    %v644 = vlaneseq
    %v645 = vshrl.u32 %v644, 7
    %v646 = vsub.s32 %v643, %v645
    %v647 = vrot.slane %v633, %v646
    %v648 = vcombine.low %v623, %v631
    %v649 = vcombine.high %v623, %v631
    %v651 = vunpack.c.l.s4 1934713408
    %v652 = vunpack.c.0.s8 %v651
    %v653 = vlaneseq
    %v654 = vshrl.u32 %v653, 7
    %v655 = vsub.s32 %v652, %v654
    %v656 = vrot.slane %v648, %v655
    %v658 = vunpack.c.l.s4 1934713408
    %v659 = vunpack.c.0.s8 %v658
    %v660 = vlaneseq
    %v661 = vshrl.u32 %v660, 7
    %v662 = vsub.s32 %v659, %v661
    %v663 = vrot.slane %v649, %v662
    %v664 = vcombine.low %v640, %v656
    %v665 = vcombine.high %v640, %v656
    %v666 = vcombine.low %v647, %v663
    %v667 = vcombine.high %v647, %v663
    %v668 = vcombine.low %v572, %v579
    %v670 = vunpack.c.l.s4 1983009808
    %v671 = vunpack.c.0.s8 %v670
    %v672 = vlaneseq
    %v673 = vshrl.u32 %v672, 7
    %v674 = vsub.s32 %v671, %v673
    %v675 = vrot.slane %v668, %v674
    %v676 = vcombine.low %v596, %v597
    %v678 = vunpack.c.l.s4 1983009808
    %v679 = vunpack.c.0.s8 %v678
    %v680 = vlaneseq
    %v681 = vshrl.u32 %v680, 7
    %v682 = vsub.s32 %v679, %v681
    %v683 = vrot.slane %v676, %v682
    %v684 = vcombine.low %v588, %v595
    %v686 = vunpack.c.l.s4 1983009808
    %v687 = vunpack.c.0.s8 %v686
    %v688 = vlaneseq
    %v689 = vshrl.u32 %v688, 7
    %v690 = vsub.s32 %v687, %v689
    %v691 = vrot.slane %v684, %v690
    %v692 = vcombine.low %v598, %v599
    %v694 = vunpack.c.l.s4 1983009808
    %v695 = vunpack.c.0.s8 %v694
    %v696 = vlaneseq
    %v697 = vshrl.u32 %v696, 7
    %v698 = vsub.s32 %v695, %v697
    %v699 = vrot.slane %v692, %v698
    %v700 = vcombine.low %v675, %v683
    %v701 = vcombine.high %v675, %v683
    %v703 = vunpack.c.l.s4 1934713408
    %v704 = vunpack.c.0.s8 %v703
    %v705 = vlaneseq
    %v706 = vshrl.u32 %v705, 7
    %v707 = vsub.s32 %v704, %v706
    %v708 = vrot.slane %v700, %v707
    %v710 = vunpack.c.l.s4 1934713408
    %v711 = vunpack.c.0.s8 %v710
    %v712 = vlaneseq
    %v713 = vshrl.u32 %v712, 7
    %v714 = vsub.s32 %v711, %v713
    %v715 = vrot.slane %v701, %v714
    %v716 = vcombine.low %v691, %v699
    %v717 = vcombine.high %v691, %v699
    %v719 = vunpack.c.l.s4 1934713408
    %v720 = vunpack.c.0.s8 %v719
    %v721 = vlaneseq
    %v722 = vshrl.u32 %v721, 7
    %v723 = vsub.s32 %v720, %v722
    %v724 = vrot.slane %v716, %v723
    %v726 = vunpack.c.l.s4 1934713408
    %v727 = vunpack.c.0.s8 %v726
    %v728 = vlaneseq
    %v729 = vshrl.u32 %v728, 7
    %v730 = vsub.s32 %v727, %v729
    %v731 = vrot.slane %v717, %v730
    %v732 = vcombine.low %v708, %v724
    %v733 = vcombine.high %v708, %v724
    %v734 = vcombine.low %v715, %v731
    %v735 = vcombine.high %v715, %v731
    %736 = vrot.lane.b32.xlu0 %v140, 64
    %v737 = vpop.permute.xlu0 %736
    %738 = vrot.lane.b32.xlu0 %v145, 64
    %v739 = vpop.permute.xlu0 %738
    %740 = vrot.lane.b32.xlu0 %v151, 64
    %v741 = vpop.permute.xlu0 %740
    %742 = vrot.lane.b32.xlu0 %v153, 64
    %v743 = vpop.permute.xlu0 %742
    %744 = vrot.lane.b32.xlu0 %v157, 64
    %v745 = vpop.permute.xlu0 %744
    %746 = vrot.lane.b32.xlu0 %v159, 64
    %v747 = vpop.permute.xlu0 %746
    %748 = vrot.lane.b32.xlu0 %v163, 64
    %v749 = vpop.permute.xlu0 %748
    %750 = vrot.lane.b32.xlu0 %v165, 64
    %v751 = vpop.permute.xlu0 %750
    %v760 = vcombine.low %v737, %v745
    %v761 = vcombine.high %v737, %v745
    %v763 = vunpack.c.l.s4 1983009808
    %v764 = vunpack.c.0.s8 %v763
    %v765 = vlaneseq
    %v766 = vshrl.u32 %v765, 7
    %v767 = vsub.s32 %v764, %v766
    %v768 = vrot.slane %v760, %v767
    %v770 = vunpack.c.l.s4 1983009808
    %v771 = vunpack.c.0.s8 %v770
    %v772 = vlaneseq
    %v773 = vshrl.u32 %v772, 7
    %v774 = vsub.s32 %v771, %v773
    %v775 = vrot.slane %v761, %v774
    %v776 = vcombine.low %v741, %v749
    %v777 = vcombine.high %v741, %v749
    %v779 = vunpack.c.l.s4 1983009808
    %v780 = vunpack.c.0.s8 %v779
    %v781 = vlaneseq
    %v782 = vshrl.u32 %v781, 7
    %v783 = vsub.s32 %v780, %v782
    %v784 = vrot.slane %v776, %v783
    %v786 = vunpack.c.l.s4 1983009808
    %v787 = vunpack.c.0.s8 %v786
    %v788 = vlaneseq
    %v789 = vshrl.u32 %v788, 7
    %v790 = vsub.s32 %v787, %v789
    %v791 = vrot.slane %v777, %v790
    %v792 = vcombine.low %v768, %v784
    %v793 = vcombine.high %v768, %v784
    %v795 = vunpack.c.l.s4 1934713408
    %v796 = vunpack.c.0.s8 %v795
    %v797 = vlaneseq
    %v798 = vshrl.u32 %v797, 7
    %v799 = vsub.s32 %v796, %v798
    %v800 = vrot.slane %v792, %v799
    %v802 = vunpack.c.l.s4 1934713408
    %v803 = vunpack.c.0.s8 %v802
    %v804 = vlaneseq
    %v805 = vshrl.u32 %v804, 7
    %v806 = vsub.s32 %v803, %v805
    %v807 = vrot.slane %v793, %v806
    %v808 = vcombine.low %v775, %v791
    %v809 = vcombine.high %v775, %v791
    %v811 = vunpack.c.l.s4 1934713408
    %v812 = vunpack.c.0.s8 %v811
    %v813 = vlaneseq
    %v814 = vshrl.u32 %v813, 7
    %v815 = vsub.s32 %v812, %v814
    %v816 = vrot.slane %v808, %v815
    %v818 = vunpack.c.l.s4 1934713408
    %v819 = vunpack.c.0.s8 %v818
    %v820 = vlaneseq
    %v821 = vshrl.u32 %v820, 7
    %v822 = vsub.s32 %v819, %v821
    %v823 = vrot.slane %v809, %v822
    %v824 = vcombine.high %v800, 0.0
    %v825 = vcombine.high %v807, 0.0
    %v826 = vcombine.high %v816, 0.0
    %v827 = vcombine.high %v823, 0.0
    %v828 = vcombine.low %v739, %v747
    %v829 = vcombine.high %v739, %v747
    %v831 = vunpack.c.l.s4 1983009808
    %v832 = vunpack.c.0.s8 %v831
    %v833 = vlaneseq
    %v834 = vshrl.u32 %v833, 7
    %v835 = vsub.s32 %v832, %v834
    %v836 = vrot.slane %v828, %v835
    %v838 = vunpack.c.l.s4 1983009808
    %v839 = vunpack.c.0.s8 %v838
    %v840 = vlaneseq
    %v841 = vshrl.u32 %v840, 7
    %v842 = vsub.s32 %v839, %v841
    %v843 = vrot.slane %v829, %v842
    %v844 = vcombine.low %v743, %v751
    %v845 = vcombine.high %v743, %v751
    %v847 = vunpack.c.l.s4 1983009808
    %v848 = vunpack.c.0.s8 %v847
    %v849 = vlaneseq
    %v850 = vshrl.u32 %v849, 7
    %v851 = vsub.s32 %v848, %v850
    %v852 = vrot.slane %v844, %v851
    %v854 = vunpack.c.l.s4 1983009808
    %v855 = vunpack.c.0.s8 %v854
    %v856 = vlaneseq
    %v857 = vshrl.u32 %v856, 7
    %v858 = vsub.s32 %v855, %v857
    %v859 = vrot.slane %v845, %v858
    %v860 = vcombine.low %v836, %v852
    %v861 = vcombine.high %v836, %v852
    %v863 = vunpack.c.l.s4 1934713408
    %v864 = vunpack.c.0.s8 %v863
    %v865 = vlaneseq
    %v866 = vshrl.u32 %v865, 7
    %v867 = vsub.s32 %v864, %v866
    %v868 = vrot.slane %v860, %v867
    %v870 = vunpack.c.l.s4 1934713408
    %v871 = vunpack.c.0.s8 %v870
    %v872 = vlaneseq
    %v873 = vshrl.u32 %v872, 7
    %v874 = vsub.s32 %v871, %v873
    %v875 = vrot.slane %v861, %v874
    %v876 = vcombine.low %v843, %v859
    %v877 = vcombine.high %v843, %v859
    %v879 = vunpack.c.l.s4 1934713408
    %v880 = vunpack.c.0.s8 %v879
    %v881 = vlaneseq
    %v882 = vshrl.u32 %v881, 7
    %v883 = vsub.s32 %v880, %v882
    %v884 = vrot.slane %v876, %v883
    %v886 = vunpack.c.l.s4 1934713408
    %v887 = vunpack.c.0.s8 %v886
    %v888 = vlaneseq
    %v889 = vshrl.u32 %v888, 7
    %v890 = vsub.s32 %v887, %v889
    %v891 = vrot.slane %v877, %v890
    %v892 = vcombine.high %v868, 0.0
    %v893 = vcombine.high %v875, 0.0
    %v894 = vcombine.high %v884, 0.0
    %v895 = vcombine.high %v891, 0.0
    %v896 = vcombine.low %v800, %v807
    %v898 = vunpack.c.l.s4 1983009808
    %v899 = vunpack.c.0.s8 %v898
    %v900 = vlaneseq
    %v901 = vshrl.u32 %v900, 7
    %v902 = vsub.s32 %v899, %v901
    %v903 = vrot.slane %v896, %v902
    %v904 = vcombine.low %v824, %v825
    %v906 = vunpack.c.l.s4 1983009808
    %v907 = vunpack.c.0.s8 %v906
    %v908 = vlaneseq
    %v909 = vshrl.u32 %v908, 7
    %v910 = vsub.s32 %v907, %v909
    %v911 = vrot.slane %v904, %v910
    %v912 = vcombine.low %v816, %v823
    %v914 = vunpack.c.l.s4 1983009808
    %v915 = vunpack.c.0.s8 %v914
    %v916 = vlaneseq
    %v917 = vshrl.u32 %v916, 7
    %v918 = vsub.s32 %v915, %v917
    %v919 = vrot.slane %v912, %v918
    %v920 = vcombine.low %v826, %v827
    %v922 = vunpack.c.l.s4 1983009808
    %v923 = vunpack.c.0.s8 %v922
    %v924 = vlaneseq
    %v925 = vshrl.u32 %v924, 7
    %v926 = vsub.s32 %v923, %v925
    %v927 = vrot.slane %v920, %v926
    %v928 = vcombine.low %v903, %v911
    %v929 = vcombine.high %v903, %v911
    %v931 = vunpack.c.l.s4 1934713408
    %v932 = vunpack.c.0.s8 %v931
    %v933 = vlaneseq
    %v934 = vshrl.u32 %v933, 7
    %v935 = vsub.s32 %v932, %v934
    %v936 = vrot.slane %v928, %v935
    %v938 = vunpack.c.l.s4 1934713408
    %v939 = vunpack.c.0.s8 %v938
    %v940 = vlaneseq
    %v941 = vshrl.u32 %v940, 7
    %v942 = vsub.s32 %v939, %v941
    %v943 = vrot.slane %v929, %v942
    %v944 = vcombine.low %v919, %v927
    %v945 = vcombine.high %v919, %v927
    %v947 = vunpack.c.l.s4 1934713408
    %v948 = vunpack.c.0.s8 %v947
    %v949 = vlaneseq
    %v950 = vshrl.u32 %v949, 7
    %v951 = vsub.s32 %v948, %v950
    %v952 = vrot.slane %v944, %v951
    %v954 = vunpack.c.l.s4 1934713408
    %v955 = vunpack.c.0.s8 %v954
    %v956 = vlaneseq
    %v957 = vshrl.u32 %v956, 7
    %v958 = vsub.s32 %v955, %v957
    %v959 = vrot.slane %v945, %v958
    %v960 = vcombine.low %v936, %v952
    %v961 = vcombine.high %v936, %v952
    %v962 = vcombine.low %v943, %v959
    %v963 = vcombine.high %v943, %v959
    %v964 = vcombine.low %v868, %v875
    %v966 = vunpack.c.l.s4 1983009808
    %v967 = vunpack.c.0.s8 %v966
    %v968 = vlaneseq
    %v969 = vshrl.u32 %v968, 7
    %v970 = vsub.s32 %v967, %v969
    %v971 = vrot.slane %v964, %v970
    %v972 = vcombine.low %v892, %v893
    %v974 = vunpack.c.l.s4 1983009808
    %v975 = vunpack.c.0.s8 %v974
    %v976 = vlaneseq
    %v977 = vshrl.u32 %v976, 7
    %v978 = vsub.s32 %v975, %v977
    %v979 = vrot.slane %v972, %v978
    %v980 = vcombine.low %v884, %v891
    %v982 = vunpack.c.l.s4 1983009808
    %v983 = vunpack.c.0.s8 %v982
    %v984 = vlaneseq
    %v985 = vshrl.u32 %v984, 7
    %v986 = vsub.s32 %v983, %v985
    %v987 = vrot.slane %v980, %v986
    %v988 = vcombine.low %v894, %v895
    %v990 = vunpack.c.l.s4 1983009808
    %v991 = vunpack.c.0.s8 %v990
    %v992 = vlaneseq
    %v993 = vshrl.u32 %v992, 7
    %v994 = vsub.s32 %v991, %v993
    %v995 = vrot.slane %v988, %v994
    %v996 = vcombine.low %v971, %v979
    %v997 = vcombine.high %v971, %v979
    %v999 = vunpack.c.l.s4 1934713408
    %v1000 = vunpack.c.0.s8 %v999
    %v1001 = vlaneseq
    %v1002 = vshrl.u32 %v1001, 7
    %v1003 = vsub.s32 %v1000, %v1002
    %v1004 = vrot.slane %v996, %v1003
    %v1006 = vunpack.c.l.s4 1934713408
    %v1007 = vunpack.c.0.s8 %v1006
    %v1008 = vlaneseq
    %v1009 = vshrl.u32 %v1008, 7
    %v1010 = vsub.s32 %v1007, %v1009
    %v1011 = vrot.slane %v997, %v1010
    %v1012 = vcombine.low %v987, %v995
    %v1013 = vcombine.high %v987, %v995
    %v1015 = vunpack.c.l.s4 1934713408
    %v1016 = vunpack.c.0.s8 %v1015
    %v1017 = vlaneseq
    %v1018 = vshrl.u32 %v1017, 7
    %v1019 = vsub.s32 %v1016, %v1018
    %v1020 = vrot.slane %v1012, %v1019
    %v1022 = vunpack.c.l.s4 1934713408
    %v1023 = vunpack.c.0.s8 %v1022
    %v1024 = vlaneseq
    %v1025 = vshrl.u32 %v1024, 7
    %v1026 = vsub.s32 %v1023, %v1025
    %v1027 = vrot.slane %v1013, %v1026
    %v1028 = vcombine.low %v1004, %v1020
    %v1029 = vcombine.high %v1004, %v1020
    %v1030 = vcombine.low %v1011, %v1027
    %v1031 = vcombine.high %v1011, %v1027
    %vm1032 = vcmask 64512
    %v1034 = vsel %vm1032, %v368, 0
    %v1037 = vsel %vm1032, %v664, 0
    %1039 = vmatprep.subr.mxu0 0.0
    %1040 = vmatpush1.xpose.msra.mxu0 %v1037
    %1041 = vmatprep.subr.mxu0 0.0
    %1042 = vmatpush1.xpose.msra.mxu0 0.0
    %1043 = vmatprep.subr.mxu0 0.0
    %1044 = vmatpush1.xpose.msra.mxu0 0.0
    %1045 = vmatprep.subr.mxu0 0.0
    %1046 = vmatpush1.xpose.msra.mxu0 0.0
    %1047 = vmatprep.subr.mxu0 0.0
    %1048 = vmatpush1.xpose.msra.mxu0 0.0
    %1049 = vmatprep.subr.mxu0 0.0
    %1050 = vmatpush1.xpose.msra.mxu0 0.0
    %1051 = vmatprep.subr.mxu0 0.0
    %1052 = vmatpush1.xpose.msra.mxu0 0.0
    %1053 = vmatprep.subr.mxu0 0.0
    %1054 = vmatpush1.xpose.msra.mxu0 0.0
    %1055 = vmatprep.subr.mxu0 0.0
    %1056 = vmatpush1.xpose.msra.mxu0 0.0
    %1057 = vmatprep.subr.mxu0 0.0
    %1058 = vmatpush1.xpose.msra.mxu0 0.0
    %1059 = vmatprep.subr.mxu0 0.0
    %1060 = vmatpush1.xpose.msra.mxu0 0.0
    %1061 = vmatprep.subr.mxu0 0.0
    %1062 = vmatpush1.xpose.msra.mxu0 0.0
    %1063 = vmatprep.subr.mxu0 0.0
    %1064 = vmatpush1.xpose.msra.mxu0 0.0
    %1065 = vmatprep.subr.mxu0 0.0
    %1066 = vmatpush1.xpose.msra.mxu0 0.0
    %1067 = vmatprep.subr.mxu0 0.0
    %1068 = vmatpush1.xpose.msra.mxu0 0.0
    %1069 = vmatprep.subr.mxu0 0.0
    %1070 = vmatpush1.xpose.msra.mxu0 0.0
    %1071 = vmatprep.subr.mxu0 0.0
    %1072 = vmatpush1.xpose.msra.mxu0 0.0
    %1073 = vmatprep.subr.mxu0 0.0
    %1074 = vmatpush1.xpose.msra.mxu0 0.0
    %1075 = vmatprep.subr.mxu0 0.0
    %1076 = vmatpush1.xpose.msra.mxu0 0.0
    %1077 = vmatprep.subr.mxu0 0.0
    %1078 = vmatpush1.xpose.msra.mxu0 0.0
    %1079 = vmatprep.subr.mxu0 0.0
    %1080 = vmatpush1.xpose.msra.mxu0 0.0
    %1081 = vmatprep.subr.mxu0 0.0
    %1082 = vmatpush1.xpose.msra.mxu0 0.0
    %1083 = vmatprep.subr.mxu0 0.0
    %1084 = vmatpush1.xpose.msra.mxu0 0.0
    %1085 = vmatprep.subr.mxu0 0.0
    %1086 = vmatpush1.xpose.msra.mxu0 0.0
    %1087 = vmatprep.subr.mxu0 0.0
    %1088 = vmatpush1.xpose.msra.mxu0 0.0
    %1089 = vmatprep.subr.mxu0 0.0
    %1090 = vmatpush1.xpose.msra.mxu0 0.0
    %1091 = vmatprep.subr.mxu0 0.0
    %1092 = vmatpush1.xpose.msra.mxu0 0.0
    %1093 = vmatprep.subr.mxu0 0.0
    %1094 = vmatpush1.xpose.msra.mxu0 0.0
    %1095 = vmatprep.subr.mxu0 0.0
    %1096 = vmatpush1.xpose.msra.mxu0 0.0
    %1097 = vmatprep.subr.mxu0 0.0
    %1098 = vmatpush1.xpose.msra.mxu0 0.0
    %1099 = vmatprep.subr.mxu0 0.0
    %1100 = vmatpush1.xpose.msra.mxu0 0.0
    %1101 = vmatprep.subr.mxu0 0.0
    %1102 = vmatpush1.xpose.msra.mxu0 0.0
    %1103 = vmatprep.mubr.f32.mxu0 0.0
    %1104 = vmatmul.mubr.f32.gmra.mrb[0].mxu0 %v1034
    %v1105 = vpop.f32.mrb[0].mxu0
    %v1106 = vadd.f32 0.0, %v1105
    %v1107 = vpop.f32.mrb[0].mxu0
    %1108 = vdwg.mxu0
    %v1110 = vsel %vm1032, %v369, 0
    %v1113 = vsel %vm1032, %v665, 0
    %1115 = vmatprep.subr.mxu0 0.0
    %1116 = vmatpush1.xpose.msra.mxu0 %v1113
    %1117 = vmatprep.subr.mxu0 0.0
    %1118 = vmatpush1.xpose.msra.mxu0 0.0
    %1119 = vmatprep.subr.mxu0 0.0
    %1120 = vmatpush1.xpose.msra.mxu0 0.0
    %1121 = vmatprep.subr.mxu0 0.0
    %1122 = vmatpush1.xpose.msra.mxu0 0.0
    %1123 = vmatprep.subr.mxu0 0.0
    %1124 = vmatpush1.xpose.msra.mxu0 0.0
    %1125 = vmatprep.subr.mxu0 0.0
    %1126 = vmatpush1.xpose.msra.mxu0 0.0
    %1127 = vmatprep.subr.mxu0 0.0
    %1128 = vmatpush1.xpose.msra.mxu0 0.0
    %1129 = vmatprep.subr.mxu0 0.0
    %1130 = vmatpush1.xpose.msra.mxu0 0.0
    %1131 = vmatprep.subr.mxu0 0.0
    %1132 = vmatpush1.xpose.msra.mxu0 0.0
    %1133 = vmatprep.subr.mxu0 0.0
    %1134 = vmatpush1.xpose.msra.mxu0 0.0
    %1135 = vmatprep.subr.mxu0 0.0
    %1136 = vmatpush1.xpose.msra.mxu0 0.0
    %1137 = vmatprep.subr.mxu0 0.0
    %1138 = vmatpush1.xpose.msra.mxu0 0.0
    %1139 = vmatprep.subr.mxu0 0.0
    %1140 = vmatpush1.xpose.msra.mxu0 0.0
    %1141 = vmatprep.subr.mxu0 0.0
    %1142 = vmatpush1.xpose.msra.mxu0 0.0
    %1143 = vmatprep.subr.mxu0 0.0
    %1144 = vmatpush1.xpose.msra.mxu0 0.0
    %1145 = vmatprep.subr.mxu0 0.0
    %1146 = vmatpush1.xpose.msra.mxu0 0.0
    %1147 = vmatprep.subr.mxu0 0.0
    %1148 = vmatpush1.xpose.msra.mxu0 0.0
    %1149 = vmatprep.subr.mxu0 0.0
    %1150 = vmatpush1.xpose.msra.mxu0 0.0
    %1151 = vmatprep.subr.mxu0 0.0
    %1152 = vmatpush1.xpose.msra.mxu0 0.0
    %1153 = vmatprep.subr.mxu0 0.0
    %1154 = vmatpush1.xpose.msra.mxu0 0.0
    %1155 = vmatprep.subr.mxu0 0.0
    %1156 = vmatpush1.xpose.msra.mxu0 0.0
    %1157 = vmatprep.subr.mxu0 0.0
    %1158 = vmatpush1.xpose.msra.mxu0 0.0
    %1159 = vmatprep.subr.mxu0 0.0
    %1160 = vmatpush1.xpose.msra.mxu0 0.0
    %1161 = vmatprep.subr.mxu0 0.0
    %1162 = vmatpush1.xpose.msra.mxu0 0.0
    %1163 = vmatprep.subr.mxu0 0.0
    %1164 = vmatpush1.xpose.msra.mxu0 0.0
    %1165 = vmatprep.subr.mxu0 0.0
    %1166 = vmatpush1.xpose.msra.mxu0 0.0
    %1167 = vmatprep.subr.mxu0 0.0
    %1168 = vmatpush1.xpose.msra.mxu0 0.0
    %1169 = vmatprep.subr.mxu0 0.0
    %1170 = vmatpush1.xpose.msra.mxu0 0.0
    %1171 = vmatprep.subr.mxu0 0.0
    %1172 = vmatpush1.xpose.msra.mxu0 0.0
    %1173 = vmatprep.subr.mxu0 0.0
    %1174 = vmatpush1.xpose.msra.mxu0 0.0
    %1175 = vmatprep.subr.mxu0 0.0
    %1176 = vmatpush1.xpose.msra.mxu0 0.0
    %1177 = vmatprep.subr.mxu0 0.0
    %1178 = vmatpush1.xpose.msra.mxu0 0.0
    %1179 = vmatprep.mubr.f32.mxu0 0.0
    %1180 = vmatmul.mubr.f32.gmra.mrb[0].mxu0 %v1110
    %v1181 = vpop.f32.mrb[0].mxu0
    %v1182 = vadd.f32 0.0, %v1181
    %v1183 = vpop.f32.mrb[0].mxu0
    %1184 = vdwg.mxu0
    %v1186 = vsel %vm1032, %v370, 0
    %v1189 = vsel %vm1032, %v666, 0
    %1191 = vmatprep.subr.mxu0 0.0
    %1192 = vmatpush1.xpose.msra.mxu0 %v1189
    %1193 = vmatprep.subr.mxu0 0.0
    %1194 = vmatpush1.xpose.msra.mxu0 0.0
    %1195 = vmatprep.subr.mxu0 0.0
    %1196 = vmatpush1.xpose.msra.mxu0 0.0
    %1197 = vmatprep.subr.mxu0 0.0
    %1198 = vmatpush1.xpose.msra.mxu0 0.0
    %1199 = vmatprep.subr.mxu0 0.0
    %1200 = vmatpush1.xpose.msra.mxu0 0.0
    %1201 = vmatprep.subr.mxu0 0.0
    %1202 = vmatpush1.xpose.msra.mxu0 0.0
    %1203 = vmatprep.subr.mxu0 0.0
    %1204 = vmatpush1.xpose.msra.mxu0 0.0
    %1205 = vmatprep.subr.mxu0 0.0
    %1206 = vmatpush1.xpose.msra.mxu0 0.0
    %1207 = vmatprep.subr.mxu0 0.0
    %1208 = vmatpush1.xpose.msra.mxu0 0.0
    %1209 = vmatprep.subr.mxu0 0.0
    %1210 = vmatpush1.xpose.msra.mxu0 0.0
    %1211 = vmatprep.subr.mxu0 0.0
    %1212 = vmatpush1.xpose.msra.mxu0 0.0
    %1213 = vmatprep.subr.mxu0 0.0
    %1214 = vmatpush1.xpose.msra.mxu0 0.0
    %1215 = vmatprep.subr.mxu0 0.0
    %1216 = vmatpush1.xpose.msra.mxu0 0.0
    %1217 = vmatprep.subr.mxu0 0.0
    %1218 = vmatpush1.xpose.msra.mxu0 0.0
    %1219 = vmatprep.subr.mxu0 0.0
    %1220 = vmatpush1.xpose.msra.mxu0 0.0
    %1221 = vmatprep.subr.mxu0 0.0
    %1222 = vmatpush1.xpose.msra.mxu0 0.0
    %1223 = vmatprep.subr.mxu0 0.0
    %1224 = vmatpush1.xpose.msra.mxu0 0.0
    %1225 = vmatprep.subr.mxu0 0.0
    %1226 = vmatpush1.xpose.msra.mxu0 0.0
    %1227 = vmatprep.subr.mxu0 0.0
    %1228 = vmatpush1.xpose.msra.mxu0 0.0
    %1229 = vmatprep.subr.mxu0 0.0
    %1230 = vmatpush1.xpose.msra.mxu0 0.0
    %1231 = vmatprep.subr.mxu0 0.0
    %1232 = vmatpush1.xpose.msra.mxu0 0.0
    %1233 = vmatprep.subr.mxu0 0.0
    %1234 = vmatpush1.xpose.msra.mxu0 0.0
    %1235 = vmatprep.subr.mxu0 0.0
    %1236 = vmatpush1.xpose.msra.mxu0 0.0
    %1237 = vmatprep.subr.mxu0 0.0
    %1238 = vmatpush1.xpose.msra.mxu0 0.0
    %1239 = vmatprep.subr.mxu0 0.0
    %1240 = vmatpush1.xpose.msra.mxu0 0.0
    %1241 = vmatprep.subr.mxu0 0.0
    %1242 = vmatpush1.xpose.msra.mxu0 0.0
    %1243 = vmatprep.subr.mxu0 0.0
    %1244 = vmatpush1.xpose.msra.mxu0 0.0
    %1245 = vmatprep.subr.mxu0 0.0
    %1246 = vmatpush1.xpose.msra.mxu0 0.0
    %1247 = vmatprep.subr.mxu0 0.0
    %1248 = vmatpush1.xpose.msra.mxu0 0.0
    %1249 = vmatprep.subr.mxu0 0.0
    %1250 = vmatpush1.xpose.msra.mxu0 0.0
    %1251 = vmatprep.subr.mxu0 0.0
    %1252 = vmatpush1.xpose.msra.mxu0 0.0
    %1253 = vmatprep.subr.mxu0 0.0
    %1254 = vmatpush1.xpose.msra.mxu0 0.0
    %1255 = vmatprep.mubr.f32.mxu0 0.0
    %1256 = vmatmul.mubr.f32.gmra.mrb[0].mxu0 %v1186
    %v1257 = vpop.f32.mrb[0].mxu0
    %v1258 = vadd.f32 0.0, %v1257
    %v1259 = vpop.f32.mrb[0].mxu0
    %1260 = vdwg.mxu0
    %v1262 = vsel %vm1032, %v371, 0
    %v1265 = vsel %vm1032, %v667, 0
    %1267 = vmatprep.subr.mxu0 0.0
    %1268 = vmatpush1.xpose.msra.mxu0 %v1265
    %1269 = vmatprep.subr.mxu0 0.0
    %1270 = vmatpush1.xpose.msra.mxu0 0.0
    %1271 = vmatprep.subr.mxu0 0.0
    %1272 = vmatpush1.xpose.msra.mxu0 0.0
    %1273 = vmatprep.subr.mxu0 0.0
    %1274 = vmatpush1.xpose.msra.mxu0 0.0
    %1275 = vmatprep.subr.mxu0 0.0
    %1276 = vmatpush1.xpose.msra.mxu0 0.0
    %1277 = vmatprep.subr.mxu0 0.0
    %1278 = vmatpush1.xpose.msra.mxu0 0.0
    %1279 = vmatprep.subr.mxu0 0.0
    %1280 = vmatpush1.xpose.msra.mxu0 0.0
    %1281 = vmatprep.subr.mxu0 0.0
    %1282 = vmatpush1.xpose.msra.mxu0 0.0
    %1283 = vmatprep.subr.mxu0 0.0
    %1284 = vmatpush1.xpose.msra.mxu0 0.0
    %1285 = vmatprep.subr.mxu0 0.0
    %1286 = vmatpush1.xpose.msra.mxu0 0.0
    %1287 = vmatprep.subr.mxu0 0.0
    %1288 = vmatpush1.xpose.msra.mxu0 0.0
    %1289 = vmatprep.subr.mxu0 0.0
    %1290 = vmatpush1.xpose.msra.mxu0 0.0
    %1291 = vmatprep.subr.mxu0 0.0
    %1292 = vmatpush1.xpose.msra.mxu0 0.0
    %1293 = vmatprep.subr.mxu0 0.0
    %1294 = vmatpush1.xpose.msra.mxu0 0.0
    %1295 = vmatprep.subr.mxu0 0.0
    %1296 = vmatpush1.xpose.msra.mxu0 0.0
    %1297 = vmatprep.subr.mxu0 0.0
    %1298 = vmatpush1.xpose.msra.mxu0 0.0
    %1299 = vmatprep.subr.mxu0 0.0
    %1300 = vmatpush1.xpose.msra.mxu0 0.0
    %1301 = vmatprep.subr.mxu0 0.0
    %1302 = vmatpush1.xpose.msra.mxu0 0.0
    %1303 = vmatprep.subr.mxu0 0.0
    %1304 = vmatpush1.xpose.msra.mxu0 0.0
    %1305 = vmatprep.subr.mxu0 0.0
    %1306 = vmatpush1.xpose.msra.mxu0 0.0
    %1307 = vmatprep.subr.mxu0 0.0
    %1308 = vmatpush1.xpose.msra.mxu0 0.0
    %1309 = vmatprep.subr.mxu0 0.0
    %1310 = vmatpush1.xpose.msra.mxu0 0.0
    %1311 = vmatprep.subr.mxu0 0.0
    %1312 = vmatpush1.xpose.msra.mxu0 0.0
    %1313 = vmatprep.subr.mxu0 0.0
    %1314 = vmatpush1.xpose.msra.mxu0 0.0
    %1315 = vmatprep.subr.mxu0 0.0
    %1316 = vmatpush1.xpose.msra.mxu0 0.0
    %1317 = vmatprep.subr.mxu0 0.0
    %1318 = vmatpush1.xpose.msra.mxu0 0.0
    %1319 = vmatprep.subr.mxu0 0.0
    %1320 = vmatpush1.xpose.msra.mxu0 0.0
    %1321 = vmatprep.subr.mxu0 0.0
    %1322 = vmatpush1.xpose.msra.mxu0 0.0
    %1323 = vmatprep.subr.mxu0 0.0
    %1324 = vmatpush1.xpose.msra.mxu0 0.0
    %1325 = vmatprep.subr.mxu0 0.0
    %1326 = vmatpush1.xpose.msra.mxu0 0.0
    %1327 = vmatprep.subr.mxu0 0.0
    %1328 = vmatpush1.xpose.msra.mxu0 0.0
    %1329 = vmatprep.subr.mxu0 0.0
    %1330 = vmatpush1.xpose.msra.mxu0 0.0
    %1331 = vmatprep.mubr.f32.mxu0 0.0
    %1332 = vmatmul.mubr.f32.gmra.mrb[0].mxu0 %v1262
    %v1333 = vpop.f32.mrb[0].mxu0
    %v1334 = vadd.f32 0.0, %v1333
    %v1335 = vpop.f32.mrb[0].mxu0
    %1336 = vdwg.mxu0
    %v1338 = vsel %vm1032, %v436, 0
    %v1341 = vsel %vm1032, %v732, 0
    %1343 = vmatprep.subr.mxu0 0.0
    %1344 = vmatpush1.xpose.msra.mxu0 %v1341
    %1345 = vmatprep.subr.mxu0 0.0
    %1346 = vmatpush1.xpose.msra.mxu0 0.0
    %1347 = vmatprep.subr.mxu0 0.0
    %1348 = vmatpush1.xpose.msra.mxu0 0.0
    %1349 = vmatprep.subr.mxu0 0.0
    %1350 = vmatpush1.xpose.msra.mxu0 0.0
    %1351 = vmatprep.subr.mxu0 0.0
    %1352 = vmatpush1.xpose.msra.mxu0 0.0
    %1353 = vmatprep.subr.mxu0 0.0
    %1354 = vmatpush1.xpose.msra.mxu0 0.0
    %1355 = vmatprep.subr.mxu0 0.0
    %1356 = vmatpush1.xpose.msra.mxu0 0.0
    %1357 = vmatprep.subr.mxu0 0.0
    %1358 = vmatpush1.xpose.msra.mxu0 0.0
    %1359 = vmatprep.subr.mxu0 0.0
    %1360 = vmatpush1.xpose.msra.mxu0 0.0
    %1361 = vmatprep.subr.mxu0 0.0
    %1362 = vmatpush1.xpose.msra.mxu0 0.0
    %1363 = vmatprep.subr.mxu0 0.0
    %1364 = vmatpush1.xpose.msra.mxu0 0.0
    %1365 = vmatprep.subr.mxu0 0.0
    %1366 = vmatpush1.xpose.msra.mxu0 0.0
    %1367 = vmatprep.subr.mxu0 0.0
    %1368 = vmatpush1.xpose.msra.mxu0 0.0
    %1369 = vmatprep.subr.mxu0 0.0
    %1370 = vmatpush1.xpose.msra.mxu0 0.0
    %1371 = vmatprep.subr.mxu0 0.0
    %1372 = vmatpush1.xpose.msra.mxu0 0.0
    %1373 = vmatprep.subr.mxu0 0.0
    %1374 = vmatpush1.xpose.msra.mxu0 0.0
    %1375 = vmatprep.subr.mxu0 0.0
    %1376 = vmatpush1.xpose.msra.mxu0 0.0
    %1377 = vmatprep.subr.mxu0 0.0
    %1378 = vmatpush1.xpose.msra.mxu0 0.0
    %1379 = vmatprep.subr.mxu0 0.0
    %1380 = vmatpush1.xpose.msra.mxu0 0.0
    %1381 = vmatprep.subr.mxu0 0.0
    %1382 = vmatpush1.xpose.msra.mxu0 0.0
    %1383 = vmatprep.subr.mxu0 0.0
    %1384 = vmatpush1.xpose.msra.mxu0 0.0
    %1385 = vmatprep.subr.mxu0 0.0
    %1386 = vmatpush1.xpose.msra.mxu0 0.0
    %1387 = vmatprep.subr.mxu0 0.0
    %1388 = vmatpush1.xpose.msra.mxu0 0.0
    %1389 = vmatprep.subr.mxu0 0.0
    %1390 = vmatpush1.xpose.msra.mxu0 0.0
    %1391 = vmatprep.subr.mxu0 0.0
    %1392 = vmatpush1.xpose.msra.mxu0 0.0
    %1393 = vmatprep.subr.mxu0 0.0
    %1394 = vmatpush1.xpose.msra.mxu0 0.0
    %1395 = vmatprep.subr.mxu0 0.0
    %1396 = vmatpush1.xpose.msra.mxu0 0.0
    %1397 = vmatprep.subr.mxu0 0.0
    %1398 = vmatpush1.xpose.msra.mxu0 0.0
    %1399 = vmatprep.subr.mxu0 0.0
    %1400 = vmatpush1.xpose.msra.mxu0 0.0
    %1401 = vmatprep.subr.mxu0 0.0
    %1402 = vmatpush1.xpose.msra.mxu0 0.0
    %1403 = vmatprep.subr.mxu0 0.0
    %1404 = vmatpush1.xpose.msra.mxu0 0.0
    %1405 = vmatprep.subr.mxu0 0.0
    %1406 = vmatpush1.xpose.msra.mxu0 0.0
    %1407 = vmatprep.mubr.f32.mxu0 0.0
    %1408 = vmatmul.mubr.f32.gmra.mrb[0].mxu0 %v1338
    %v1409 = vpop.f32.mrb[0].mxu0
    %v1410 = vadd.f32 0.0, %v1409
    %v1411 = vpop.f32.mrb[0].mxu0
    %1412 = vdwg.mxu0
    %v1414 = vsel %vm1032, %v437, 0
    %v1417 = vsel %vm1032, %v733, 0
    %1419 = vmatprep.subr.mxu0 0.0
    %1420 = vmatpush1.xpose.msra.mxu0 %v1417
    %1421 = vmatprep.subr.mxu0 0.0
    %1422 = vmatpush1.xpose.msra.mxu0 0.0
    %1423 = vmatprep.subr.mxu0 0.0
    %1424 = vmatpush1.xpose.msra.mxu0 0.0
    %1425 = vmatprep.subr.mxu0 0.0
    %1426 = vmatpush1.xpose.msra.mxu0 0.0
    %1427 = vmatprep.subr.mxu0 0.0
    %1428 = vmatpush1.xpose.msra.mxu0 0.0
    %1429 = vmatprep.subr.mxu0 0.0
    %1430 = vmatpush1.xpose.msra.mxu0 0.0
    %1431 = vmatprep.subr.mxu0 0.0
    %1432 = vmatpush1.xpose.msra.mxu0 0.0
    %1433 = vmatprep.subr.mxu0 0.0
    %1434 = vmatpush1.xpose.msra.mxu0 0.0
    %1435 = vmatprep.subr.mxu0 0.0
    %1436 = vmatpush1.xpose.msra.mxu0 0.0
    %1437 = vmatprep.subr.mxu0 0.0
    %1438 = vmatpush1.xpose.msra.mxu0 0.0
    %1439 = vmatprep.subr.mxu0 0.0
    %1440 = vmatpush1.xpose.msra.mxu0 0.0
    %1441 = vmatprep.subr.mxu0 0.0
    %1442 = vmatpush1.xpose.msra.mxu0 0.0
    %1443 = vmatprep.subr.mxu0 0.0
    %1444 = vmatpush1.xpose.msra.mxu0 0.0
    %1445 = vmatprep.subr.mxu0 0.0
    %1446 = vmatpush1.xpose.msra.mxu0 0.0
    %1447 = vmatprep.subr.mxu0 0.0
    %1448 = vmatpush1.xpose.msra.mxu0 0.0
    %1449 = vmatprep.subr.mxu0 0.0
    %1450 = vmatpush1.xpose.msra.mxu0 0.0
    %1451 = vmatprep.subr.mxu0 0.0
    %1452 = vmatpush1.xpose.msra.mxu0 0.0
    %1453 = vmatprep.subr.mxu0 0.0
    %1454 = vmatpush1.xpose.msra.mxu0 0.0
    %1455 = vmatprep.subr.mxu0 0.0
    %1456 = vmatpush1.xpose.msra.mxu0 0.0
    %1457 = vmatprep.subr.mxu0 0.0
    %1458 = vmatpush1.xpose.msra.mxu0 0.0
    %1459 = vmatprep.subr.mxu0 0.0
    %1460 = vmatpush1.xpose.msra.mxu0 0.0
    %1461 = vmatprep.subr.mxu0 0.0
    %1462 = vmatpush1.xpose.msra.mxu0 0.0
    %1463 = vmatprep.subr.mxu0 0.0
    %1464 = vmatpush1.xpose.msra.mxu0 0.0
    %1465 = vmatprep.subr.mxu0 0.0
    %1466 = vmatpush1.xpose.msra.mxu0 0.0
    %1467 = vmatprep.subr.mxu0 0.0
    %1468 = vmatpush1.xpose.msra.mxu0 0.0
    %1469 = vmatprep.subr.mxu0 0.0
    %1470 = vmatpush1.xpose.msra.mxu0 0.0
    %1471 = vmatprep.subr.mxu0 0.0
    %1472 = vmatpush1.xpose.msra.mxu0 0.0
    %1473 = vmatprep.subr.mxu0 0.0
    %1474 = vmatpush1.xpose.msra.mxu0 0.0
    %1475 = vmatprep.subr.mxu0 0.0
    %1476 = vmatpush1.xpose.msra.mxu0 0.0
    %1477 = vmatprep.subr.mxu0 0.0
    %1478 = vmatpush1.xpose.msra.mxu0 0.0
    %1479 = vmatprep.subr.mxu0 0.0
    %1480 = vmatpush1.xpose.msra.mxu0 0.0
    %1481 = vmatprep.subr.mxu0 0.0
    %1482 = vmatpush1.xpose.msra.mxu0 0.0
    %1483 = vmatprep.mubr.f32.mxu0 0.0
    %1484 = vmatmul.mubr.f32.gmra.mrb[0].mxu0 %v1414
    %v1485 = vpop.f32.mrb[0].mxu0
    %v1486 = vadd.f32 0.0, %v1485
    %v1487 = vpop.f32.mrb[0].mxu0
    %1488 = vdwg.mxu0
    %v1490 = vsel %vm1032, %v438, 0
    %v1493 = vsel %vm1032, %v734, 0
    %1495 = vmatprep.subr.mxu0 0.0
    %1496 = vmatpush1.xpose.msra.mxu0 %v1493
    %1497 = vmatprep.subr.mxu0 0.0
    %1498 = vmatpush1.xpose.msra.mxu0 0.0
    %1499 = vmatprep.subr.mxu0 0.0
    %1500 = vmatpush1.xpose.msra.mxu0 0.0
    %1501 = vmatprep.subr.mxu0 0.0
    %1502 = vmatpush1.xpose.msra.mxu0 0.0
    %1503 = vmatprep.subr.mxu0 0.0
    %1504 = vmatpush1.xpose.msra.mxu0 0.0
    %1505 = vmatprep.subr.mxu0 0.0
    %1506 = vmatpush1.xpose.msra.mxu0 0.0
    %1507 = vmatprep.subr.mxu0 0.0
    %1508 = vmatpush1.xpose.msra.mxu0 0.0
    %1509 = vmatprep.subr.mxu0 0.0
    %1510 = vmatpush1.xpose.msra.mxu0 0.0
    %1511 = vmatprep.subr.mxu0 0.0
    %1512 = vmatpush1.xpose.msra.mxu0 0.0
    %1513 = vmatprep.subr.mxu0 0.0
    %1514 = vmatpush1.xpose.msra.mxu0 0.0
    %1515 = vmatprep.subr.mxu0 0.0
    %1516 = vmatpush1.xpose.msra.mxu0 0.0
    %1517 = vmatprep.subr.mxu0 0.0
    %1518 = vmatpush1.xpose.msra.mxu0 0.0
    %1519 = vmatprep.subr.mxu0 0.0
    %1520 = vmatpush1.xpose.msra.mxu0 0.0
    %1521 = vmatprep.subr.mxu0 0.0
    %1522 = vmatpush1.xpose.msra.mxu0 0.0
    %1523 = vmatprep.subr.mxu0 0.0
    %1524 = vmatpush1.xpose.msra.mxu0 0.0
    %1525 = vmatprep.subr.mxu0 0.0
    %1526 = vmatpush1.xpose.msra.mxu0 0.0
    %1527 = vmatprep.subr.mxu0 0.0
    %1528 = vmatpush1.xpose.msra.mxu0 0.0
    %1529 = vmatprep.subr.mxu0 0.0
    %1530 = vmatpush1.xpose.msra.mxu0 0.0
    %1531 = vmatprep.subr.mxu0 0.0
    %1532 = vmatpush1.xpose.msra.mxu0 0.0
    %1533 = vmatprep.subr.mxu0 0.0
    %1534 = vmatpush1.xpose.msra.mxu0 0.0
    %1535 = vmatprep.subr.mxu0 0.0
    %1536 = vmatpush1.xpose.msra.mxu0 0.0
    %1537 = vmatprep.subr.mxu0 0.0
    %1538 = vmatpush1.xpose.msra.mxu0 0.0
    %1539 = vmatprep.subr.mxu0 0.0
    %1540 = vmatpush1.xpose.msra.mxu0 0.0
    %1541 = vmatprep.subr.mxu0 0.0
    %1542 = vmatpush1.xpose.msra.mxu0 0.0
    %1543 = vmatprep.subr.mxu0 0.0
    %1544 = vmatpush1.xpose.msra.mxu0 0.0
    %1545 = vmatprep.subr.mxu0 0.0
    %1546 = vmatpush1.xpose.msra.mxu0 0.0
    %1547 = vmatprep.subr.mxu0 0.0
    %1548 = vmatpush1.xpose.msra.mxu0 0.0
    %1549 = vmatprep.subr.mxu0 0.0
    %1550 = vmatpush1.xpose.msra.mxu0 0.0
    %1551 = vmatprep.subr.mxu0 0.0
    %1552 = vmatpush1.xpose.msra.mxu0 0.0
    %1553 = vmatprep.subr.mxu0 0.0
    %1554 = vmatpush1.xpose.msra.mxu0 0.0
    %1555 = vmatprep.subr.mxu0 0.0
    %1556 = vmatpush1.xpose.msra.mxu0 0.0
    %1557 = vmatprep.subr.mxu0 0.0
    %1558 = vmatpush1.xpose.msra.mxu0 0.0
    %1559 = vmatprep.mubr.f32.mxu0 0.0
    %1560 = vmatmul.mubr.f32.gmra.mrb[0].mxu0 %v1490
    %v1561 = vpop.f32.mrb[0].mxu0
    %v1562 = vadd.f32 0.0, %v1561
    %v1563 = vpop.f32.mrb[0].mxu0
    %1564 = vdwg.mxu0
    %v1566 = vsel %vm1032, %v439, 0
    %v1569 = vsel %vm1032, %v735, 0
    %1571 = vmatprep.subr.mxu0 0.0
    %1572 = vmatpush1.xpose.msra.mxu0 %v1569
    %1573 = vmatprep.subr.mxu0 0.0
    %1574 = vmatpush1.xpose.msra.mxu0 0.0
    %1575 = vmatprep.subr.mxu0 0.0
    %1576 = vmatpush1.xpose.msra.mxu0 0.0
    %1577 = vmatprep.subr.mxu0 0.0
    %1578 = vmatpush1.xpose.msra.mxu0 0.0
    %1579 = vmatprep.subr.mxu0 0.0
    %1580 = vmatpush1.xpose.msra.mxu0 0.0
    %1581 = vmatprep.subr.mxu0 0.0
    %1582 = vmatpush1.xpose.msra.mxu0 0.0
    %1583 = vmatprep.subr.mxu0 0.0
    %1584 = vmatpush1.xpose.msra.mxu0 0.0
    %1585 = vmatprep.subr.mxu0 0.0
    %1586 = vmatpush1.xpose.msra.mxu0 0.0
    %1587 = vmatprep.subr.mxu0 0.0
    %1588 = vmatpush1.xpose.msra.mxu0 0.0
    %1589 = vmatprep.subr.mxu0 0.0
    %1590 = vmatpush1.xpose.msra.mxu0 0.0
    %1591 = vmatprep.subr.mxu0 0.0
    %1592 = vmatpush1.xpose.msra.mxu0 0.0
    %1593 = vmatprep.subr.mxu0 0.0
    %1594 = vmatpush1.xpose.msra.mxu0 0.0
    %1595 = vmatprep.subr.mxu0 0.0
    %1596 = vmatpush1.xpose.msra.mxu0 0.0
    %1597 = vmatprep.subr.mxu0 0.0
    %1598 = vmatpush1.xpose.msra.mxu0 0.0
    %1599 = vmatprep.subr.mxu0 0.0
    %1600 = vmatpush1.xpose.msra.mxu0 0.0
    %1601 = vmatprep.subr.mxu0 0.0
    %1602 = vmatpush1.xpose.msra.mxu0 0.0
    %1603 = vmatprep.subr.mxu0 0.0
    %1604 = vmatpush1.xpose.msra.mxu0 0.0
    %1605 = vmatprep.subr.mxu0 0.0
    %1606 = vmatpush1.xpose.msra.mxu0 0.0
    %1607 = vmatprep.subr.mxu0 0.0
    %1608 = vmatpush1.xpose.msra.mxu0 0.0
    %1609 = vmatprep.subr.mxu0 0.0
    %1610 = vmatpush1.xpose.msra.mxu0 0.0
    %1611 = vmatprep.subr.mxu0 0.0
    %1612 = vmatpush1.xpose.msra.mxu0 0.0
    %1613 = vmatprep.subr.mxu0 0.0
    %1614 = vmatpush1.xpose.msra.mxu0 0.0
    %1615 = vmatprep.subr.mxu0 0.0
    %1616 = vmatpush1.xpose.msra.mxu0 0.0
    %1617 = vmatprep.subr.mxu0 0.0
    %1618 = vmatpush1.xpose.msra.mxu0 0.0
    %1619 = vmatprep.subr.mxu0 0.0
    %1620 = vmatpush1.xpose.msra.mxu0 0.0
    %1621 = vmatprep.subr.mxu0 0.0
    %1622 = vmatpush1.xpose.msra.mxu0 0.0
    %1623 = vmatprep.subr.mxu0 0.0
    %1624 = vmatpush1.xpose.msra.mxu0 0.0
    %1625 = vmatprep.subr.mxu0 0.0
    %1626 = vmatpush1.xpose.msra.mxu0 0.0
    %1627 = vmatprep.subr.mxu0 0.0
    %1628 = vmatpush1.xpose.msra.mxu0 0.0
    %1629 = vmatprep.subr.mxu0 0.0
    %1630 = vmatpush1.xpose.msra.mxu0 0.0
    %1631 = vmatprep.subr.mxu0 0.0
    %1632 = vmatpush1.xpose.msra.mxu0 0.0
    %1633 = vmatprep.subr.mxu0 0.0
    %1634 = vmatpush1.xpose.msra.mxu0 0.0
    %1635 = vmatprep.mubr.f32.mxu0 0.0
    %1636 = vmatmul.mubr.f32.gmra.mrb[0].mxu0 %v1566
    %v1637 = vpop.f32.mrb[0].mxu0
    %v1638 = vadd.f32 0.0, %v1637
    %v1639 = vpop.f32.mrb[0].mxu0
    %1640 = vdwg.mxu0
    %v1641 = vmul.f32 %v1106, 0.17677669
    %v1642 = vmul.f32 %v1182, 0.17677669
    %v1643 = vmul.f32 %v1258, 0.17677669
    %v1644 = vmul.f32 %v1334, 0.17677669
    %v1645 = vmul.f32 %v1410, 0.17677669
    %v1646 = vmul.f32 %v1486, 0.17677669
    %v1647 = vmul.f32 %v1562, 0.17677669
    %v1648 = vmul.f32 %v1638, 0.17677669
    %v1649 = vlaneseq
    %v1650 = vshrl.u32 %v1649, 7
    %v1651 = vlaneseq
    %v1652 = vand.u32 %v1651, 127
    %vm1653 = vcmp.le.s32.totalorder %v1652, %v1650
    %v1654 = vsel %vm1653, 1, 0
    %vm1655 = vcmp.eq.s32.totalorder %v1654, 1
    %v1656 = vsel %vm1655, %v1641, -1e+30
    %v1657 = vsel %vm1655, %v1642, -1e+30
    %v1658 = vsel %vm1655, %v1643, -1e+30
    %v1659 = vsel %vm1655, %v1644, -1e+30
    %v1660 = vsel %vm1655, %v1645, -1e+30
    %v1661 = vsel %vm1655, %v1646, -1e+30
    %v1662 = vsel %vm1655, %v1647, -1e+30
    %v1663 = vsel %vm1655, %v1648, -1e+30
    %v1664 = vsel %vm1032, %v1656, -inf
    %1665 = vmax.xlane.f32.xlu0 %v1664
    %v1666 = vpop.xlane.xlu0 %1665
    %v1667 = vsel %vm1032, %v1657, -inf
    %1668 = vmax.xlane.f32.xlu0 %v1667
    %v1669 = vpop.xlane.xlu0 %1668
    %v1670 = vsel %vm1032, %v1658, -inf
    %1671 = vmax.xlane.f32.xlu0 %v1670
    %v1672 = vpop.xlane.xlu0 %1671
    %v1673 = vsel %vm1032, %v1659, -inf
    %1674 = vmax.xlane.f32.xlu0 %v1673
    %v1675 = vpop.xlane.xlu0 %1674
    %v1676 = vsel %vm1032, %v1660, -inf
    %1677 = vmax.xlane.f32.xlu0 %v1676
    %v1678 = vpop.xlane.xlu0 %1677
    %v1679 = vsel %vm1032, %v1661, -inf
    %1680 = vmax.xlane.f32.xlu0 %v1679
    %v1681 = vpop.xlane.xlu0 %1680
    %v1682 = vsel %vm1032, %v1662, -inf
    %1683 = vmax.xlane.f32.xlu0 %v1682
    %v1684 = vpop.xlane.xlu0 %1683
    %v1685 = vsel %vm1032, %v1663, -inf
    %1686 = vmax.xlane.f32.xlu0 %v1685
    %v1687 = vpop.xlane.xlu0 %1686
    %v1688 = vsub.f32 %v1656, %v1666
    %v1689 = vsub.f32 %v1657, %v1669
    %v1690 = vsub.f32 %v1658, %v1672
    %v1691 = vsub.f32 %v1659, %v1675
    %v1692 = vsub.f32 %v1660, %v1678
    %v1693 = vsub.f32 %v1661, %v1681
    %v1694 = vsub.f32 %v1662, %v1684
    %v1695 = vsub.f32 %v1663, %v1687
    %v1696 = vmul.f32 %v1688, 1.442695
    %v1697 = vpow.pop %v1696
    %v1698 = vmul.f32 %v1689, 1.442695
    %v1699 = vpow.pop %v1698
    %v1700 = vmul.f32 %v1690, 1.442695
    %v1701 = vpow.pop %v1700
    %v1702 = vmul.f32 %v1691, 1.442695
    %v1703 = vpow.pop %v1702
    %v1704 = vmul.f32 %v1692, 1.442695
    %v1705 = vpow.pop %v1704
    %v1706 = vmul.f32 %v1693, 1.442695
    %v1707 = vpow.pop %v1706
    %v1708 = vmul.f32 %v1694, 1.442695
    %v1709 = vpow.pop %v1708
    %v1710 = vmul.f32 %v1695, 1.442695
    %v1711 = vpow.pop %v1710
    %v1712 = vsel %vm1032, %v1697, 0.0
    %1713 = vadd.xlane.f32.xlu0 %v1712
    %v1714 = vpop.xlane.xlu0 %1713
    %v1715 = vsel %vm1032, %v1699, 0.0
    %1716 = vadd.xlane.f32.xlu0 %v1715
    %v1717 = vpop.xlane.xlu0 %1716
    %v1718 = vsel %vm1032, %v1701, 0.0
    %1719 = vadd.xlane.f32.xlu0 %v1718
    %v1720 = vpop.xlane.xlu0 %1719
    %v1721 = vsel %vm1032, %v1703, 0.0
    %1722 = vadd.xlane.f32.xlu0 %v1721
    %v1723 = vpop.xlane.xlu0 %1722
    %v1724 = vsel %vm1032, %v1705, 0.0
    %1725 = vadd.xlane.f32.xlu0 %v1724
    %v1726 = vpop.xlane.xlu0 %1725
    %v1727 = vsel %vm1032, %v1707, 0.0
    %1728 = vadd.xlane.f32.xlu0 %v1727
    %v1729 = vpop.xlane.xlu0 %1728
    %v1730 = vsel %vm1032, %v1709, 0.0
    %1731 = vadd.xlane.f32.xlu0 %v1730
    %v1732 = vpop.xlane.xlu0 %1731
    %v1733 = vsel %vm1032, %v1711, 0.0
    %1734 = vadd.xlane.f32.xlu0 %v1733
    %v1735 = vpop.xlane.xlu0 %1734
    %v1736 = vrcp.pop %v1714
    %v1737 = vrcp.pop %v1717
    %v1738 = vrcp.pop %v1720
    %v1739 = vrcp.pop %v1723
    %v1740 = vrcp.pop %v1726
    %v1741 = vrcp.pop %v1729
    %v1742 = vrcp.pop %v1732
    %v1743 = vrcp.pop %v1735
    %v1744 = vmul.f32 %v1697, %v1736
    %v1745 = vmul.f32 %v1699, %v1737
    %v1746 = vmul.f32 %v1701, %v1738
    %v1747 = vmul.f32 %v1703, %v1739
    %v1748 = vmul.f32 %v1705, %v1740
    %v1749 = vmul.f32 %v1707, %v1741
    %v1750 = vmul.f32 %v1709, %v1742
    %v1751 = vmul.f32 %v1711, %v1743
    %v1752 = vpack.c.bf16 %v1744, %v1744
    %v1753 = vpack.c.bf16 %v1745, %v1745
    %v1754 = vpack.c.bf16 %v1746, %v1746
    %v1755 = vpack.c.bf16 %v1747, %v1747
    %v1756 = vpack.c.bf16 %v1748, %v1748
    %v1757 = vpack.c.bf16 %v1749, %v1749
    %v1758 = vpack.c.bf16 %v1750, %v1750
    %v1759 = vpack.c.bf16 %v1751, %v1751
    %v1760 = vpack.c.bf16 %v960, %v960
    %v1761 = vpack.c.bf16 %v961, %v961
    %v1762 = vpack.c.bf16 %v962, %v962
    %v1763 = vpack.c.bf16 %v963, %v963
    %v1764 = vpack.c.bf16 %v1028, %v1028
    %v1765 = vpack.c.bf16 %v1029, %v1029
    %v1766 = vpack.c.bf16 %v1030, %v1030
    %v1767 = vpack.c.bf16 %v1031, %v1031
    %v1769 = vsel %vm1032, %v1752, 0
    %vm1771 = vcmask 1043456
    %v1773 = vsel %vm1771, %v1760, 0
    %1775 = vmatprep.subr.bf16.mxu0 0
    %1776 = vmatpush1.bf16.msra.mxu0 %v1773
    %1777 = vmatprep.subr.bf16.mxu0 0
    %1778 = vmatpush1.bf16.msra.mxu0 0
    %1779 = vmatprep.subr.bf16.mxu0 0
    %1780 = vmatpush1.bf16.msra.mxu0 0
    %1781 = vmatprep.subr.bf16.mxu0 0
    %1782 = vmatpush1.bf16.msra.mxu0 0
    %1783 = vmatprep.subr.bf16.mxu0 0
    %1784 = vmatpush1.bf16.msra.mxu0 0
    %1785 = vmatprep.subr.bf16.mxu0 0
    %1786 = vmatpush1.bf16.msra.mxu0 0
    %1787 = vmatprep.subr.bf16.mxu0 0
    %1788 = vmatpush1.bf16.msra.mxu0 0
    %1789 = vmatprep.subr.bf16.mxu0 0
    %1790 = vmatpush1.bf16.msra.mxu0 0
    %1791 = vmatprep.subr.bf16.mxu0 0
    %1792 = vmatpush1.bf16.msra.mxu0 0
    %1793 = vmatprep.subr.bf16.mxu0 0
    %1794 = vmatpush1.bf16.msra.mxu0 0
    %1795 = vmatprep.subr.bf16.mxu0 0
    %1796 = vmatpush1.bf16.msra.mxu0 0
    %1797 = vmatprep.subr.bf16.mxu0 0
    %1798 = vmatpush1.bf16.msra.mxu0 0
    %1799 = vmatprep.subr.bf16.mxu0 0
    %1800 = vmatpush1.bf16.msra.mxu0 0
    %1801 = vmatprep.subr.bf16.mxu0 0
    %1802 = vmatpush1.bf16.msra.mxu0 0
    %1803 = vmatprep.subr.bf16.mxu0 0
    %1804 = vmatpush1.bf16.msra.mxu0 0
    %1805 = vmatprep.subr.bf16.mxu0 0
    %1806 = vmatpush1.bf16.msra.mxu0 0
    %1807 = vmatprep.mubr.bf16.mxu0 0
    %1808 = vmatmul.mubr.bf16.gmra.mrb[0].mxu0 %v1769
    %v1809 = vpop.f32.mrb[0].mxu0
    %v1810 = vadd.f32 0.0, %v1809
    %v1811 = vpop.f32.mrb[0].mxu0
    %v1812 = vpop.f32.mrb[0].mxu0
    %v1813 = vpop.f32.mrb[0].mxu0
    %1814 = vdwg.mxu0
    %v1816 = vsel %vm1032, %v1753, 0
    %v1819 = vsel %vm1771, %v1761, 0
    %1821 = vmatprep.subr.bf16.mxu0 0
    %1822 = vmatpush1.bf16.msra.mxu0 %v1819
    %1823 = vmatprep.subr.bf16.mxu0 0
    %1824 = vmatpush1.bf16.msra.mxu0 0
    %1825 = vmatprep.subr.bf16.mxu0 0
    %1826 = vmatpush1.bf16.msra.mxu0 0
    %1827 = vmatprep.subr.bf16.mxu0 0
    %1828 = vmatpush1.bf16.msra.mxu0 0
    %1829 = vmatprep.subr.bf16.mxu0 0
    %1830 = vmatpush1.bf16.msra.mxu0 0
    %1831 = vmatprep.subr.bf16.mxu0 0
    %1832 = vmatpush1.bf16.msra.mxu0 0
    %1833 = vmatprep.subr.bf16.mxu0 0
    %1834 = vmatpush1.bf16.msra.mxu0 0
    %1835 = vmatprep.subr.bf16.mxu0 0
    %1836 = vmatpush1.bf16.msra.mxu0 0
    %1837 = vmatprep.subr.bf16.mxu0 0
    %1838 = vmatpush1.bf16.msra.mxu0 0
    %1839 = vmatprep.subr.bf16.mxu0 0
    %1840 = vmatpush1.bf16.msra.mxu0 0
    %1841 = vmatprep.subr.bf16.mxu0 0
    %1842 = vmatpush1.bf16.msra.mxu0 0
    %1843 = vmatprep.subr.bf16.mxu0 0
    %1844 = vmatpush1.bf16.msra.mxu0 0
    %1845 = vmatprep.subr.bf16.mxu0 0
    %1846 = vmatpush1.bf16.msra.mxu0 0
    %1847 = vmatprep.subr.bf16.mxu0 0
    %1848 = vmatpush1.bf16.msra.mxu0 0
    %1849 = vmatprep.subr.bf16.mxu0 0
    %1850 = vmatpush1.bf16.msra.mxu0 0
    %1851 = vmatprep.subr.bf16.mxu0 0
    %1852 = vmatpush1.bf16.msra.mxu0 0
    %1853 = vmatprep.mubr.bf16.mxu0 0
    %1854 = vmatmul.mubr.bf16.gmra.mrb[0].mxu0 %v1816
    %v1855 = vpop.f32.mrb[0].mxu0
    %v1856 = vadd.f32 0.0, %v1855
    %v1857 = vpop.f32.mrb[0].mxu0
    %v1858 = vpop.f32.mrb[0].mxu0
    %v1859 = vpop.f32.mrb[0].mxu0
    %1860 = vdwg.mxu0
    %v1862 = vsel %vm1032, %v1754, 0
    %v1865 = vsel %vm1771, %v1762, 0
    %1867 = vmatprep.subr.bf16.mxu0 0
    %1868 = vmatpush1.bf16.msra.mxu0 %v1865
    %1869 = vmatprep.subr.bf16.mxu0 0
    %1870 = vmatpush1.bf16.msra.mxu0 0
    %1871 = vmatprep.subr.bf16.mxu0 0
    %1872 = vmatpush1.bf16.msra.mxu0 0
    %1873 = vmatprep.subr.bf16.mxu0 0
    %1874 = vmatpush1.bf16.msra.mxu0 0
    %1875 = vmatprep.subr.bf16.mxu0 0
    %1876 = vmatpush1.bf16.msra.mxu0 0
    %1877 = vmatprep.subr.bf16.mxu0 0
    %1878 = vmatpush1.bf16.msra.mxu0 0
    %1879 = vmatprep.subr.bf16.mxu0 0
    %1880 = vmatpush1.bf16.msra.mxu0 0
    %1881 = vmatprep.subr.bf16.mxu0 0
    %1882 = vmatpush1.bf16.msra.mxu0 0
    %1883 = vmatprep.subr.bf16.mxu0 0
    %1884 = vmatpush1.bf16.msra.mxu0 0
    %1885 = vmatprep.subr.bf16.mxu0 0
    %1886 = vmatpush1.bf16.msra.mxu0 0
    %1887 = vmatprep.subr.bf16.mxu0 0
    %1888 = vmatpush1.bf16.msra.mxu0 0
    %1889 = vmatprep.subr.bf16.mxu0 0
    %1890 = vmatpush1.bf16.msra.mxu0 0
    %1891 = vmatprep.subr.bf16.mxu0 0
    %1892 = vmatpush1.bf16.msra.mxu0 0
    %1893 = vmatprep.subr.bf16.mxu0 0
    %1894 = vmatpush1.bf16.msra.mxu0 0
    %1895 = vmatprep.subr.bf16.mxu0 0
    %1896 = vmatpush1.bf16.msra.mxu0 0
    %1897 = vmatprep.subr.bf16.mxu0 0
    %1898 = vmatpush1.bf16.msra.mxu0 0
    %1899 = vmatprep.mubr.bf16.mxu0 0
    %1900 = vmatmul.mubr.bf16.gmra.mrb[0].mxu0 %v1862
    %v1901 = vpop.f32.mrb[0].mxu0
    %v1902 = vadd.f32 0.0, %v1901
    %v1903 = vpop.f32.mrb[0].mxu0
    %v1904 = vpop.f32.mrb[0].mxu0
    %v1905 = vpop.f32.mrb[0].mxu0
    %1906 = vdwg.mxu0
    %v1908 = vsel %vm1032, %v1755, 0
    %v1911 = vsel %vm1771, %v1763, 0
    %1913 = vmatprep.subr.bf16.mxu0 0
    %1914 = vmatpush1.bf16.msra.mxu0 %v1911
    %1915 = vmatprep.subr.bf16.mxu0 0
    %1916 = vmatpush1.bf16.msra.mxu0 0
    %1917 = vmatprep.subr.bf16.mxu0 0
    %1918 = vmatpush1.bf16.msra.mxu0 0
    %1919 = vmatprep.subr.bf16.mxu0 0
    %1920 = vmatpush1.bf16.msra.mxu0 0
    %1921 = vmatprep.subr.bf16.mxu0 0
    %1922 = vmatpush1.bf16.msra.mxu0 0
    %1923 = vmatprep.subr.bf16.mxu0 0
    %1924 = vmatpush1.bf16.msra.mxu0 0
    %1925 = vmatprep.subr.bf16.mxu0 0
    %1926 = vmatpush1.bf16.msra.mxu0 0
    %1927 = vmatprep.subr.bf16.mxu0 0
    %1928 = vmatpush1.bf16.msra.mxu0 0
    %1929 = vmatprep.subr.bf16.mxu0 0
    %1930 = vmatpush1.bf16.msra.mxu0 0
    %1931 = vmatprep.subr.bf16.mxu0 0
    %1932 = vmatpush1.bf16.msra.mxu0 0
    %1933 = vmatprep.subr.bf16.mxu0 0
    %1934 = vmatpush1.bf16.msra.mxu0 0
    %1935 = vmatprep.subr.bf16.mxu0 0
    %1936 = vmatpush1.bf16.msra.mxu0 0
    %1937 = vmatprep.subr.bf16.mxu0 0
    %1938 = vmatpush1.bf16.msra.mxu0 0
    %1939 = vmatprep.subr.bf16.mxu0 0
    %1940 = vmatpush1.bf16.msra.mxu0 0
    %1941 = vmatprep.subr.bf16.mxu0 0
    %1942 = vmatpush1.bf16.msra.mxu0 0
    %1943 = vmatprep.subr.bf16.mxu0 0
    %1944 = vmatpush1.bf16.msra.mxu0 0
    %1945 = vmatprep.mubr.bf16.mxu0 0
    %1946 = vmatmul.mubr.bf16.gmra.mrb[0].mxu0 %v1908
    %v1947 = vpop.f32.mrb[0].mxu0
    %v1948 = vadd.f32 0.0, %v1947
    %v1949 = vpop.f32.mrb[0].mxu0
    %v1950 = vpop.f32.mrb[0].mxu0
    %v1951 = vpop.f32.mrb[0].mxu0
    %1952 = vdwg.mxu0
    %v1954 = vsel %vm1032, %v1756, 0
    %v1957 = vsel %vm1771, %v1764, 0
    %1959 = vmatprep.subr.bf16.mxu0 0
    %1960 = vmatpush1.bf16.msra.mxu0 %v1957
    %1961 = vmatprep.subr.bf16.mxu0 0
    %1962 = vmatpush1.bf16.msra.mxu0 0
    %1963 = vmatprep.subr.bf16.mxu0 0
    %1964 = vmatpush1.bf16.msra.mxu0 0
    %1965 = vmatprep.subr.bf16.mxu0 0
    %1966 = vmatpush1.bf16.msra.mxu0 0
    %1967 = vmatprep.subr.bf16.mxu0 0
    %1968 = vmatpush1.bf16.msra.mxu0 0
    %1969 = vmatprep.subr.bf16.mxu0 0
    %1970 = vmatpush1.bf16.msra.mxu0 0
    %1971 = vmatprep.subr.bf16.mxu0 0
    %1972 = vmatpush1.bf16.msra.mxu0 0
    %1973 = vmatprep.subr.bf16.mxu0 0
    %1974 = vmatpush1.bf16.msra.mxu0 0
    %1975 = vmatprep.subr.bf16.mxu0 0
    %1976 = vmatpush1.bf16.msra.mxu0 0
    %1977 = vmatprep.subr.bf16.mxu0 0
    %1978 = vmatpush1.bf16.msra.mxu0 0
    %1979 = vmatprep.subr.bf16.mxu0 0
    %1980 = vmatpush1.bf16.msra.mxu0 0
    %1981 = vmatprep.subr.bf16.mxu0 0
    %1982 = vmatpush1.bf16.msra.mxu0 0
    %1983 = vmatprep.subr.bf16.mxu0 0
    %1984 = vmatpush1.bf16.msra.mxu0 0
    %1985 = vmatprep.subr.bf16.mxu0 0
    %1986 = vmatpush1.bf16.msra.mxu0 0
    %1987 = vmatprep.subr.bf16.mxu0 0
    %1988 = vmatpush1.bf16.msra.mxu0 0
    %1989 = vmatprep.subr.bf16.mxu0 0
    %1990 = vmatpush1.bf16.msra.mxu0 0
    %1991 = vmatprep.mubr.bf16.mxu0 0
    %1992 = vmatmul.mubr.bf16.gmra.mrb[0].mxu0 %v1954
    %v1993 = vpop.f32.mrb[0].mxu0
    %v1994 = vadd.f32 0.0, %v1993
    %v1995 = vpop.f32.mrb[0].mxu0
    %v1996 = vpop.f32.mrb[0].mxu0
    %v1997 = vpop.f32.mrb[0].mxu0
    %1998 = vdwg.mxu0
    %v2000 = vsel %vm1032, %v1757, 0
    %v2003 = vsel %vm1771, %v1765, 0
    %2005 = vmatprep.subr.bf16.mxu0 0
    %2006 = vmatpush1.bf16.msra.mxu0 %v2003
    %2007 = vmatprep.subr.bf16.mxu0 0
    %2008 = vmatpush1.bf16.msra.mxu0 0
    %2009 = vmatprep.subr.bf16.mxu0 0
    %2010 = vmatpush1.bf16.msra.mxu0 0
    %2011 = vmatprep.subr.bf16.mxu0 0
    %2012 = vmatpush1.bf16.msra.mxu0 0
    %2013 = vmatprep.subr.bf16.mxu0 0
    %2014 = vmatpush1.bf16.msra.mxu0 0
    %2015 = vmatprep.subr.bf16.mxu0 0
    %2016 = vmatpush1.bf16.msra.mxu0 0
    %2017 = vmatprep.subr.bf16.mxu0 0
    %2018 = vmatpush1.bf16.msra.mxu0 0
    %2019 = vmatprep.subr.bf16.mxu0 0
    %2020 = vmatpush1.bf16.msra.mxu0 0
    %2021 = vmatprep.subr.bf16.mxu0 0
    %2022 = vmatpush1.bf16.msra.mxu0 0
    %2023 = vmatprep.subr.bf16.mxu0 0
    %2024 = vmatpush1.bf16.msra.mxu0 0
    %2025 = vmatprep.subr.bf16.mxu0 0
    %2026 = vmatpush1.bf16.msra.mxu0 0
    %2027 = vmatprep.subr.bf16.mxu0 0
    %2028 = vmatpush1.bf16.msra.mxu0 0
    %2029 = vmatprep.subr.bf16.mxu0 0
    %2030 = vmatpush1.bf16.msra.mxu0 0
    %2031 = vmatprep.subr.bf16.mxu0 0
    %2032 = vmatpush1.bf16.msra.mxu0 0
    %2033 = vmatprep.subr.bf16.mxu0 0
    %2034 = vmatpush1.bf16.msra.mxu0 0
    %2035 = vmatprep.subr.bf16.mxu0 0
    %2036 = vmatpush1.bf16.msra.mxu0 0
    %2037 = vmatprep.mubr.bf16.mxu0 0
    %2038 = vmatmul.mubr.bf16.gmra.mrb[0].mxu0 %v2000
    %v2039 = vpop.f32.mrb[0].mxu0
    %v2040 = vadd.f32 0.0, %v2039
    %v2041 = vpop.f32.mrb[0].mxu0
    %v2042 = vpop.f32.mrb[0].mxu0
    %v2043 = vpop.f32.mrb[0].mxu0
    %2044 = vdwg.mxu0
    %v2046 = vsel %vm1032, %v1758, 0
    %v2049 = vsel %vm1771, %v1766, 0
    %2051 = vmatprep.subr.bf16.mxu0 0
    %2052 = vmatpush1.bf16.msra.mxu0 %v2049
    %2053 = vmatprep.subr.bf16.mxu0 0
    %2054 = vmatpush1.bf16.msra.mxu0 0
    %2055 = vmatprep.subr.bf16.mxu0 0
    %2056 = vmatpush1.bf16.msra.mxu0 0
    %2057 = vmatprep.subr.bf16.mxu0 0
    %2058 = vmatpush1.bf16.msra.mxu0 0
    %2059 = vmatprep.subr.bf16.mxu0 0
    %2060 = vmatpush1.bf16.msra.mxu0 0
    %2061 = vmatprep.subr.bf16.mxu0 0
    %2062 = vmatpush1.bf16.msra.mxu0 0
    %2063 = vmatprep.subr.bf16.mxu0 0
    %2064 = vmatpush1.bf16.msra.mxu0 0
    %2065 = vmatprep.subr.bf16.mxu0 0
    %2066 = vmatpush1.bf16.msra.mxu0 0
    %2067 = vmatprep.subr.bf16.mxu0 0
    %2068 = vmatpush1.bf16.msra.mxu0 0
    %2069 = vmatprep.subr.bf16.mxu0 0
    %2070 = vmatpush1.bf16.msra.mxu0 0
    %2071 = vmatprep.subr.bf16.mxu0 0
    %2072 = vmatpush1.bf16.msra.mxu0 0
    %2073 = vmatprep.subr.bf16.mxu0 0
    %2074 = vmatpush1.bf16.msra.mxu0 0
    %2075 = vmatprep.subr.bf16.mxu0 0
    %2076 = vmatpush1.bf16.msra.mxu0 0
    %2077 = vmatprep.subr.bf16.mxu0 0
    %2078 = vmatpush1.bf16.msra.mxu0 0
    %2079 = vmatprep.subr.bf16.mxu0 0
    %2080 = vmatpush1.bf16.msra.mxu0 0
    %2081 = vmatprep.subr.bf16.mxu0 0
    %2082 = vmatpush1.bf16.msra.mxu0 0
    %2083 = vmatprep.mubr.bf16.mxu0 0
    %2084 = vmatmul.mubr.bf16.gmra.mrb[0].mxu0 %v2046
    %v2085 = vpop.f32.mrb[0].mxu0
    %v2086 = vadd.f32 0.0, %v2085
    %v2087 = vpop.f32.mrb[0].mxu0
    %v2088 = vpop.f32.mrb[0].mxu0
    %v2089 = vpop.f32.mrb[0].mxu0
    %2090 = vdwg.mxu0
    %v2092 = vsel %vm1032, %v1759, 0
    %v2095 = vsel %vm1771, %v1767, 0
    %2097 = vmatprep.subr.bf16.mxu0 0
    %2098 = vmatpush1.bf16.msra.mxu0 %v2095
    %2099 = vmatprep.subr.bf16.mxu0 0
    %2100 = vmatpush1.bf16.msra.mxu0 0
    %2101 = vmatprep.subr.bf16.mxu0 0
    %2102 = vmatpush1.bf16.msra.mxu0 0
    %2103 = vmatprep.subr.bf16.mxu0 0
    %2104 = vmatpush1.bf16.msra.mxu0 0
    %2105 = vmatprep.subr.bf16.mxu0 0
    %2106 = vmatpush1.bf16.msra.mxu0 0
    %2107 = vmatprep.subr.bf16.mxu0 0
    %2108 = vmatpush1.bf16.msra.mxu0 0
    %2109 = vmatprep.subr.bf16.mxu0 0
    %2110 = vmatpush1.bf16.msra.mxu0 0
    %2111 = vmatprep.subr.bf16.mxu0 0
    %2112 = vmatpush1.bf16.msra.mxu0 0
    %2113 = vmatprep.subr.bf16.mxu0 0
    %2114 = vmatpush1.bf16.msra.mxu0 0
    %2115 = vmatprep.subr.bf16.mxu0 0
    %2116 = vmatpush1.bf16.msra.mxu0 0
    %2117 = vmatprep.subr.bf16.mxu0 0
    %2118 = vmatpush1.bf16.msra.mxu0 0
    %2119 = vmatprep.subr.bf16.mxu0 0
    %2120 = vmatpush1.bf16.msra.mxu0 0
    %2121 = vmatprep.subr.bf16.mxu0 0
    %2122 = vmatpush1.bf16.msra.mxu0 0
    %2123 = vmatprep.subr.bf16.mxu0 0
    %2124 = vmatpush1.bf16.msra.mxu0 0
    %2125 = vmatprep.subr.bf16.mxu0 0
    %2126 = vmatpush1.bf16.msra.mxu0 0
    %2127 = vmatprep.subr.bf16.mxu0 0
    %2128 = vmatpush1.bf16.msra.mxu0 0
    %2129 = vmatprep.mubr.bf16.mxu0 0
    %2130 = vmatmul.mubr.bf16.gmra.mrb[0].mxu0 %v2092
    %v2131 = vpop.f32.mrb[0].mxu0
    %v2132 = vadd.f32 0.0, %v2131
    %v2133 = vpop.f32.mrb[0].mxu0
    %v2134 = vpop.f32.mrb[0].mxu0
    %v2135 = vpop.f32.mrb[0].mxu0
    %2136 = vdwg.mxu0
    %v2137 = vcombine.low %v1810, %v1902
    %v2138 = vcombine.high %v1810, %v1902
    %v2140 = vunpack.c.l.s4 1983009808
    %v2141 = vunpack.c.0.s8 %v2140
    %v2142 = vlaneseq
    %v2143 = vshrl.u32 %v2142, 7
    %v2144 = vsub.s32 %v2141, %v2143
    %v2145 = vrot.slane %v2137, %v2144
    %v2147 = vunpack.c.l.s4 1983009808
    %v2148 = vunpack.c.0.s8 %v2147
    %v2149 = vlaneseq
    %v2150 = vshrl.u32 %v2149, 7
    %v2151 = vsub.s32 %v2148, %v2150
    %v2152 = vrot.slane %v2138, %v2151
    %v2153 = vcombine.low %v1856, %v1948
    %v2154 = vcombine.high %v1856, %v1948
    %v2156 = vunpack.c.l.s4 1983009808
    %v2157 = vunpack.c.0.s8 %v2156
    %v2158 = vlaneseq
    %v2159 = vshrl.u32 %v2158, 7
    %v2160 = vsub.s32 %v2157, %v2159
    %v2161 = vrot.slane %v2153, %v2160
    %v2163 = vunpack.c.l.s4 1983009808
    %v2164 = vunpack.c.0.s8 %v2163
    %v2165 = vlaneseq
    %v2166 = vshrl.u32 %v2165, 7
    %v2167 = vsub.s32 %v2164, %v2166
    %v2168 = vrot.slane %v2154, %v2167
    %v2169 = vcombine.low %v2145, %v2161
    %v2170 = vcombine.high %v2145, %v2161
    %v2172 = vunpack.c.l.s4 1934713408
    %v2173 = vunpack.c.0.s8 %v2172
    %v2174 = vlaneseq
    %v2175 = vshrl.u32 %v2174, 7
    %v2176 = vsub.s32 %v2173, %v2175
    %v2177 = vrot.slane %v2169, %v2176
    %v2179 = vunpack.c.l.s4 1934713408
    %v2180 = vunpack.c.0.s8 %v2179
    %v2181 = vlaneseq
    %v2182 = vshrl.u32 %v2181, 7
    %v2183 = vsub.s32 %v2180, %v2182
    %v2184 = vrot.slane %v2170, %v2183
    %v2185 = vcombine.low %v2152, %v2168
    %v2186 = vcombine.high %v2152, %v2168
    %v2188 = vunpack.c.l.s4 1934713408
    %v2189 = vunpack.c.0.s8 %v2188
    %v2190 = vlaneseq
    %v2191 = vshrl.u32 %v2190, 7
    %v2192 = vsub.s32 %v2189, %v2191
    %v2193 = vrot.slane %v2185, %v2192
    %v2195 = vunpack.c.l.s4 1934713408
    %v2196 = vunpack.c.0.s8 %v2195
    %v2197 = vlaneseq
    %v2198 = vshrl.u32 %v2197, 7
    %v2199 = vsub.s32 %v2196, %v2198
    %v2200 = vrot.slane %v2186, %v2199
    %v2201 = vcombine.high %v2177, 0.0
    %v2202 = vcombine.high %v2184, 0.0
    %v2203 = vcombine.high %v2193, 0.0
    %v2204 = vcombine.high %v2200, 0.0
    %v2205 = vcombine.low %v1994, %v2086
    %v2206 = vcombine.high %v1994, %v2086
    %v2208 = vunpack.c.l.s4 1983009808
    %v2209 = vunpack.c.0.s8 %v2208
    %v2210 = vlaneseq
    %v2211 = vshrl.u32 %v2210, 7
    %v2212 = vsub.s32 %v2209, %v2211
    %v2213 = vrot.slane %v2205, %v2212
    %v2215 = vunpack.c.l.s4 1983009808
    %v2216 = vunpack.c.0.s8 %v2215
    %v2217 = vlaneseq
    %v2218 = vshrl.u32 %v2217, 7
    %v2219 = vsub.s32 %v2216, %v2218
    %v2220 = vrot.slane %v2206, %v2219
    %v2221 = vcombine.low %v2040, %v2132
    %v2222 = vcombine.high %v2040, %v2132
    %v2224 = vunpack.c.l.s4 1983009808
    %v2225 = vunpack.c.0.s8 %v2224
    %v2226 = vlaneseq
    %v2227 = vshrl.u32 %v2226, 7
    %v2228 = vsub.s32 %v2225, %v2227
    %v2229 = vrot.slane %v2221, %v2228
    %v2231 = vunpack.c.l.s4 1983009808
    %v2232 = vunpack.c.0.s8 %v2231
    %v2233 = vlaneseq
    %v2234 = vshrl.u32 %v2233, 7
    %v2235 = vsub.s32 %v2232, %v2234
    %v2236 = vrot.slane %v2222, %v2235
    %v2237 = vcombine.low %v2213, %v2229
    %v2238 = vcombine.high %v2213, %v2229
    %v2240 = vunpack.c.l.s4 1934713408
    %v2241 = vunpack.c.0.s8 %v2240
    %v2242 = vlaneseq
    %v2243 = vshrl.u32 %v2242, 7
    %v2244 = vsub.s32 %v2241, %v2243
    %v2245 = vrot.slane %v2237, %v2244
    %v2247 = vunpack.c.l.s4 1934713408
    %v2248 = vunpack.c.0.s8 %v2247
    %v2249 = vlaneseq
    %v2250 = vshrl.u32 %v2249, 7
    %v2251 = vsub.s32 %v2248, %v2250
    %v2252 = vrot.slane %v2238, %v2251
    %v2253 = vcombine.low %v2220, %v2236
    %v2254 = vcombine.high %v2220, %v2236
    %v2256 = vunpack.c.l.s4 1934713408
    %v2257 = vunpack.c.0.s8 %v2256
    %v2258 = vlaneseq
    %v2259 = vshrl.u32 %v2258, 7
    %v2260 = vsub.s32 %v2257, %v2259
    %v2261 = vrot.slane %v2253, %v2260
    %v2263 = vunpack.c.l.s4 1934713408
    %v2264 = vunpack.c.0.s8 %v2263
    %v2265 = vlaneseq
    %v2266 = vshrl.u32 %v2265, 7
    %v2267 = vsub.s32 %v2264, %v2266
    %v2268 = vrot.slane %v2254, %v2267
    %v2269 = vcombine.high %v2245, 0.0
    %v2270 = vcombine.high %v2252, 0.0
    %v2271 = vcombine.high %v2261, 0.0
    %v2272 = vcombine.high %v2268, 0.0
    %v2273 = vcombine.low %v2177, %v2184
    %v2275 = vunpack.c.l.s4 1983009808
    %v2276 = vunpack.c.0.s8 %v2275
    %v2277 = vlaneseq
    %v2278 = vshrl.u32 %v2277, 7
    %v2279 = vsub.s32 %v2276, %v2278
    %v2280 = vrot.slane %v2273, %v2279
    %v2281 = vcombine.low %v2201, %v2202
    %v2283 = vunpack.c.l.s4 1983009808
    %v2284 = vunpack.c.0.s8 %v2283
    %v2285 = vlaneseq
    %v2286 = vshrl.u32 %v2285, 7
    %v2287 = vsub.s32 %v2284, %v2286
    %v2288 = vrot.slane %v2281, %v2287
    %v2289 = vcombine.low %v2193, %v2200
    %v2291 = vunpack.c.l.s4 1983009808
    %v2292 = vunpack.c.0.s8 %v2291
    %v2293 = vlaneseq
    %v2294 = vshrl.u32 %v2293, 7
    %v2295 = vsub.s32 %v2292, %v2294
    %v2296 = vrot.slane %v2289, %v2295
    %v2297 = vcombine.low %v2203, %v2204
    %v2299 = vunpack.c.l.s4 1983009808
    %v2300 = vunpack.c.0.s8 %v2299
    %v2301 = vlaneseq
    %v2302 = vshrl.u32 %v2301, 7
    %v2303 = vsub.s32 %v2300, %v2302
    %v2304 = vrot.slane %v2297, %v2303
    %v2305 = vcombine.low %v2280, %v2288
    %v2306 = vcombine.high %v2280, %v2288
    %v2308 = vunpack.c.l.s4 1934713408
    %v2309 = vunpack.c.0.s8 %v2308
    %v2310 = vlaneseq
    %v2311 = vshrl.u32 %v2310, 7
    %v2312 = vsub.s32 %v2309, %v2311
    %v2313 = vrot.slane %v2305, %v2312
    %v2315 = vunpack.c.l.s4 1934713408
    %v2316 = vunpack.c.0.s8 %v2315
    %v2317 = vlaneseq
    %v2318 = vshrl.u32 %v2317, 7
    %v2319 = vsub.s32 %v2316, %v2318
    %v2320 = vrot.slane %v2306, %v2319
    %v2321 = vcombine.low %v2296, %v2304
    %v2322 = vcombine.high %v2296, %v2304
    %v2324 = vunpack.c.l.s4 1934713408
    %v2325 = vunpack.c.0.s8 %v2324
    %v2326 = vlaneseq
    %v2327 = vshrl.u32 %v2326, 7
    %v2328 = vsub.s32 %v2325, %v2327
    %v2329 = vrot.slane %v2321, %v2328
    %v2331 = vunpack.c.l.s4 1934713408
    %v2332 = vunpack.c.0.s8 %v2331
    %v2333 = vlaneseq
    %v2334 = vshrl.u32 %v2333, 7
    %v2335 = vsub.s32 %v2332, %v2334
    %v2336 = vrot.slane %v2322, %v2335
    %v2337 = vcombine.low %v2313, %v2329
    %v2338 = vcombine.high %v2313, %v2329
    %v2339 = vcombine.low %v2320, %v2336
    %v2340 = vcombine.high %v2320, %v2336
    %v2341 = vcombine.low %v2245, %v2252
    %v2343 = vunpack.c.l.s4 1983009808
    %v2344 = vunpack.c.0.s8 %v2343
    %v2345 = vlaneseq
    %v2346 = vshrl.u32 %v2345, 7
    %v2347 = vsub.s32 %v2344, %v2346
    %v2348 = vrot.slane %v2341, %v2347
    %v2349 = vcombine.low %v2269, %v2270
    %v2351 = vunpack.c.l.s4 1983009808
    %v2352 = vunpack.c.0.s8 %v2351
    %v2353 = vlaneseq
    %v2354 = vshrl.u32 %v2353, 7
    %v2355 = vsub.s32 %v2352, %v2354
    %v2356 = vrot.slane %v2349, %v2355
    %v2357 = vcombine.low %v2261, %v2268
    %v2359 = vunpack.c.l.s4 1983009808
    %v2360 = vunpack.c.0.s8 %v2359
    %v2361 = vlaneseq
    %v2362 = vshrl.u32 %v2361, 7
    %v2363 = vsub.s32 %v2360, %v2362
    %v2364 = vrot.slane %v2357, %v2363
    %v2365 = vcombine.low %v2271, %v2272
    %v2367 = vunpack.c.l.s4 1983009808
    %v2368 = vunpack.c.0.s8 %v2367
    %v2369 = vlaneseq
    %v2370 = vshrl.u32 %v2369, 7
    %v2371 = vsub.s32 %v2368, %v2370
    %v2372 = vrot.slane %v2365, %v2371
    %v2373 = vcombine.low %v2348, %v2356
    %v2374 = vcombine.high %v2348, %v2356
    %v2376 = vunpack.c.l.s4 1934713408
    %v2377 = vunpack.c.0.s8 %v2376
    %v2378 = vlaneseq
    %v2379 = vshrl.u32 %v2378, 7
    %v2380 = vsub.s32 %v2377, %v2379
    %v2381 = vrot.slane %v2373, %v2380
    %v2383 = vunpack.c.l.s4 1934713408
    %v2384 = vunpack.c.0.s8 %v2383
    %v2385 = vlaneseq
    %v2386 = vshrl.u32 %v2385, 7
    %v2387 = vsub.s32 %v2384, %v2386
    %v2388 = vrot.slane %v2374, %v2387
    %v2389 = vcombine.low %v2364, %v2372
    %v2390 = vcombine.high %v2364, %v2372
    %v2392 = vunpack.c.l.s4 1934713408
    %v2393 = vunpack.c.0.s8 %v2392
    %v2394 = vlaneseq
    %v2395 = vshrl.u32 %v2394, 7
    %v2396 = vsub.s32 %v2393, %v2395
    %v2397 = vrot.slane %v2389, %v2396
    %v2399 = vunpack.c.l.s4 1934713408
    %v2400 = vunpack.c.0.s8 %v2399
    %v2401 = vlaneseq
    %v2402 = vshrl.u32 %v2401, 7
    %v2403 = vsub.s32 %v2400, %v2402
    %v2404 = vrot.slane %v2390, %v2403
    %v2405 = vcombine.low %v2381, %v2397
    %v2406 = vcombine.high %v2381, %v2397
    %v2407 = vcombine.low %v2388, %v2404
    %v2408 = vcombine.high %v2388, %v2404
    %2411 = vrot.lane.b32.xlu0 %v2338, 8
    %v2412 = vpop.permute.xlu0 %2411
    %2413 = vrot.lane.b32.xlu0 %v2406, 8
    %v2414 = vpop.permute.xlu0 %2413
    %2419 = vrot.lane.b32.xlu0 %v2339, 16
    %v2420 = vpop.permute.xlu0 %2419
    %2421 = vrot.lane.b32.xlu0 %v2407, 16
    %v2422 = vpop.permute.xlu0 %2421
    %2427 = vrot.lane.b32.xlu0 %v2340, 24
    %v2428 = vpop.permute.xlu0 %2427
    %2429 = vrot.lane.b32.xlu0 %v2408, 24
    %v2430 = vpop.permute.xlu0 %2429
    %v2433 = vsel %vm1032, %v2337, %v2412
    %v2434 = vsel %vm1032, %v2405, %v2414
    %vm2435 = vcmask 130048
    %v2436 = vsel %vm2435, %v2433, %v2420
    %v2437 = vsel %vm2435, %v2434, %v2422
    %vm2438 = vcmask 195584
    %v2439 = vsel %vm2438, %v2436, %v2428
    %v2440 = vsel %vm2438, %v2437, %v2430
    %v2441 = vpack.c.bf16 %v2440, %v2439
    %v2442 = vld [vmem:[#allocation7] sm:$0xf]
    %v2443 = vld [vmem:[#allocation7 + $0x4] sm:$0xf]
    %v2444 = vld [vmem:[#allocation7 + $0x8] sm:$0xf]
    %v2445 = vld [vmem:[#allocation7 + $0xc] sm:$0xf]
    %v2446 = vld [vmem:[%s3] sm:$0x1]
    %v2448 = vlaneseq
    %v2449 = vshrl.u32 %v2448, 7
    %v2450 = vsub.s32 0, %v2449
    %v2451 = vrot.slane %v2446, %v2450
    %v2457 = vunpack.c.l.b16 %v2442
    %v2458 = vunpack.c.l.b16 %v2443
    %v2459 = vunpack.c.l.b16 %v2444
    %v2460 = vunpack.c.l.b16 %v2445
    %v2461 = vpack.c.b16 %v2458, %v2457
    %v2462 = vpack.c.b16 %v2460, %v2459
    %v2466 = vsel %vm66, %v2441, 0
    %2468 = vmatprep.subr.bf16.mxu0 0
    %2469 = vmatpush1.bf16.msra.mxu0 %v2461
    %2470 = vmatprep.subr.bf16.mxu0 0
    %2471 = vmatpush1.bf16.msra.mxu0 %v2462
    %2472 = vmatprep.subr.bf16.mxu0 0
    %2473 = vmatpush1.bf16.msra.mxu0 0
    %2474 = vmatprep.subr.bf16.mxu0 0
    %2475 = vmatpush1.bf16.msra.mxu0 0
    %2476 = vmatprep.subr.bf16.mxu0 0
    %2477 = vmatpush1.bf16.msra.mxu0 0
    %2478 = vmatprep.subr.bf16.mxu0 0
    %2479 = vmatpush1.bf16.msra.mxu0 0
    %2480 = vmatprep.subr.bf16.mxu0 0
    %2481 = vmatpush1.bf16.msra.mxu0 0
    %2482 = vmatprep.subr.bf16.mxu0 0
    %2483 = vmatpush1.bf16.msra.mxu0 0
    %2484 = vmatprep.subr.bf16.mxu0 0
    %2485 = vmatpush1.bf16.msra.mxu0 0
    %2486 = vmatprep.subr.bf16.mxu0 0
    %2487 = vmatpush1.bf16.msra.mxu0 0
    %2488 = vmatprep.subr.bf16.mxu0 0
    %2489 = vmatpush1.bf16.msra.mxu0 0
    %2490 = vmatprep.subr.bf16.mxu0 0
    %2491 = vmatpush1.bf16.msra.mxu0 0
    %2492 = vmatprep.subr.bf16.mxu0 0
    %2493 = vmatpush1.bf16.msra.mxu0 0
    %2494 = vmatprep.subr.bf16.mxu0 0
    %2495 = vmatpush1.bf16.msra.mxu0 0
    %2496 = vmatprep.subr.bf16.mxu0 0
    %2497 = vmatpush1.bf16.msra.mxu0 0
    %2498 = vmatprep.subr.bf16.mxu0 0
    %2499 = vmatpush1.bf16.msra.mxu0 0
    %2500 = vmatprep.mubr.bf16.mxu0 0
    %2501 = vmatmul.mubr.bf16.gmra.mrb[0].mxu0 %v2466
    %v2502 = vpop.f32.mrb[0].mxu0
    %v2503 = vadd.f32 %v2451, %v2502
    %v2504 = vpop.f32.mrb[0].mxu0
    %v2505 = vpop.f32.mrb[0].mxu0
    %v2506 = vadd.f32 %v2451, %v2505
    %v2507 = vpop.f32.mrb[0].mxu0
    %2508 = vdwg.mxu0
    %2509 = vst.msk [vmem:[#allocation8] sm:$0xff] %vm66, %v2503
    %2510 = vst.msk [vmem:[#allocation8 + $0x8] sm:$0xff] %vm66, %v2506
    // Predicated region
    $region30: #{tpu_custom_call.1} parent=1 // pred_check
      _
    $region31: #{tpu_custom_call.1} parent=1 // pred_check_branch
      %2512 = sbr.rel (0) target = $region33
    $region32: #{tpu_custom_call.1} parent=1 // pred_region
      %s2514 = ssub.s32 256, 256
      %2515 = vsyncadd [#allocation4], %s2514
      %s2516 = sshll.u32 [#allocation8], 4
      %s2517 = int_to_ptr.vmem [resolvable:$true] %s2516
      %2522 = dma.vmem_to_hbm [thread:$0]  %s2517, 256, %s4, [#allocation4], 128, 128, 8
    $region33: #{tpu_custom_call.1} parent=1 // pred_fallthru
      _
    // Predicated region
    $region34: #{tpu_custom_call.1} parent=1 // pred_check
      _
    $region35: #{tpu_custom_call.1} parent=1 // pred_check_branch
      %2524 = sbr.rel (0) target = $region37
    $region36: #{tpu_custom_call.1} parent=1 // pred_region
      %2525 = dma.done [#allocation4], 256
    $region37: #{tpu_custom_call.1} parent=1 // pred_fallthru
      _
    %2526 = vsyncpa [#allocation3], 1
    %2527 = vsyncpa [#allocation6], 1
    %2528 = vsyncpa [#allocation4], 1

</llo_original>
